<compile_context>
chip_gen: v7x
topology: tpu7x:2x2x1
jax: 0.10.0
libtpu: 0.0.40
codegen_flags: <defaults>
</compile_context>

<pallas_src>
import functools

import jax
import jax.numpy as jnp
from jax.experimental import pallas as pl
from jax.experimental.pallas import tpu as pltpu

_VMEM_LIMIT = 32 * 1024 * 1024   # explicit scoped-VMEM budget (fits v5e/v6e/v7x)


def _sigmoid(x):
    return 1.0 / (1.0 + jnp.exp(-x))


def _choose_patch_tile(Lp, P, max_rows=512):
    """Patches per grid step; TP divides Lp and TP == Lp or TP % 8 == 0."""
    if Lp * P <= max_rows:
        return Lp
    for cand in range(max(1, max_rows // P), 0, -1):
        if Lp % cand == 0 and cand % 8 == 0:
            return cand
    # TODO(synk): awkward Lp (large prime) falls back to a whole-axis block.
    return Lp


def _choose_time_chunk(Lp, max_rows=512):
    """Timesteps per mamba grid step; TC divides Lp and TC == Lp or TC % 8 == 0."""
    if Lp <= max_rows:
        return Lp
    for cand in range(max_rows, 7, -1):
        if Lp % cand == 0 and cand % 8 == 0:
            return cand
    # TODO(synk): awkward Lp (large prime) falls back to a whole-axis block.
    return Lp


# --------------------------------------------------------------------------
# Kernel 1 (fused): Conv1d(D,D,1) + ReLU + depthwise Conv1d(D,D,P,stride=P)
#                   + inject_text (two 2D->D linears with sigmoid gating).
# Grid: (batch, patch-tile); both axes parallel; nx1 never leaves VMEM.
# --------------------------------------------------------------------------
def _local_inject_kernel(x_ref, y_ref, w1t_ref, b1_ref, w2_ref, b2_ref,
                         wfgx_ref, wfy_ref, bf_ref, wgy_ref, bg_ref, o_ref):
    bf16 = jnp.bfloat16
    P, D = w2_ref.shape
    x = x_ref[...]                                    # (TP*P, D) bf16
    rows = x.shape[0]
    TP = rows // P

    # 1x1 conv + ReLU: one tall MXU matmul (f32 accumulation).
    h = jnp.maximum(
        jnp.dot(x, w1t_ref[...], preferred_element_type=jnp.float32)
        + b1_ref[...], 0.0)                           # (TP*P, D) f32

    # depthwise stride-P conv: accumulate the P taps via (TP, D) slices so only
    # ~2x(TP, D) stays live instead of a (TP, P, D) f32 temp.
    hr = h.reshape(TP, P, D)
    nx1 = hr[:, 0, :] * w2_ref[0:1, :]
    for t in range(1, P):
        nx1 = nx1 + hr[:, t, :] * w2_ref[t:t + 1, :]
    nx1 = nx1 + b2_ref[...]                           # (TP, D) f32

    # inject_text: both nx1-consuming projections fused into one (D, 2D) matmul.
    nx1b = nx1.astype(bf16)
    fused = jnp.dot(nx1b, wfgx_ref[...],
                    preferred_element_type=jnp.float32)        # (TP, 2D)
    yrow = y_ref[...]                                 # (1, D) bf16
    y_hat = (fused[:, :D]
             + jnp.dot(yrow, wfy_ref[...], preferred_element_type=jnp.float32)
             + bf_ref[...])                           # (TP, D)
    yh = yrow.astype(jnp.float32) * _sigmoid(y_hat)   # (TP, D) f32
    o_ref[...] = (fused[:, D:]
                  + jnp.dot(yh.astype(bf16), wgy_ref[...],
                            preferred_element_type=jnp.float32)
                  + bg_ref[...])


def local_inject_pallas(x1, y, w1t, b1, w2, b2, wfgx, wfy, bf, wgy, bg,
                        *, patch_size, tile_patches):
    B, Lpad, D = x1.shape
    P = patch_size
    Lp = Lpad // P
    TP = tile_patches
    ntiles = Lp // TP
    rep2 = lambda b, t: (0, 0)

    cost = pl.CostEstimate(
        flops=int(2 * B * Lpad * D * D + 8 * B * Lp * D * D + 4 * B * Lpad * D),
        transcendentals=int(B * Lp * D),
        bytes_accessed=int(2 * (x1.size + y.size) + 4 * B * Lp * D + 12 * D * D))

    # TODO(synk): the constant-index weight specs could take
    # pipeline_mode=pl.Buffered(1) to drop their second VMEM buffer on v7x.
    return pl.pallas_call(
        _local_inject_kernel,
        out_shape=jax.ShapeDtypeStruct((B, Lp, D), jnp.float32),
        grid=(B, ntiles),
        in_specs=[
            pl.BlockSpec((None, TP * P, D), lambda b, t: (b, t, 0)),  # x1 (bf16)
            pl.BlockSpec((None, 1, D), lambda b, t: (b, 0, 0)),       # y row (bf16)
            pl.BlockSpec((D, D), rep2),        # w1t (bf16)
            pl.BlockSpec((1, D), rep2),        # b1
            pl.BlockSpec((P, D), rep2),        # depthwise taps (f32)
            pl.BlockSpec((1, D), rep2),        # b2
            pl.BlockSpec((D, 2 * D), rep2),    # [wfx | wgx] fused (bf16)
            pl.BlockSpec((D, D), rep2),        # wfy (bf16)
            pl.BlockSpec((1, D), rep2),        # bf
            pl.BlockSpec((D, D), rep2),        # wgy (bf16)
            pl.BlockSpec((1, D), rep2),        # bg
        ],
        out_specs=pl.BlockSpec((None, TP, D), lambda b, t: (b, t, 0)),
        compiler_params=pltpu.CompilerParams(
            dimension_semantics=("parallel", "parallel"),
            vmem_limit_bytes=_VMEM_LIMIT),
        cost_estimate=cost,
    )(x1, y, w1t, b1, w2, b2, wfgx, wfy, bf, wgy, bg)


# --------------------------------------------------------------------------
# Kernel 2: stand-in "mamba" block on concat([flip(x2), x2]) without ever
# materializing that concat.  Grid: (batch, 2 * n_chunks) with a persistent
# (1, D) carry scratch.  Phase 1 (flipped half) only updates the carry (its
# outputs are discarded); phase 2 runs the gated decay scan + Wo projection
# and writes the kept half.
#   u = z@Wu+bu ; g = z@Wg+bg ; a = sigmoid(A_log)
#   h_t = a*h_{t-1} + u_t ; y_t = h_t * silu(g_t) ; out = z + y@Wo + bo
# --------------------------------------------------------------------------
def _mamba_kernel(x2_ref, ape_ref, api_ref, wut_ref, bu_ref, wgt_ref, bgg_ref,
                  wot_ref, bo_ref, o_ref, h_scr, *, n_chunks):
    bf16 = jnp.bfloat16
    TC, D = ape_ref.shape
    c = pl.program_id(1)

    @pl.when(c == 0)
    def _():
        h_scr[...] = jnp.zeros_like(h_scr)

    xblk = x2_ref[...]                                # (TC, D) f32
    ape = ape_ref[...]                                # a^0 .. a^(TC-1)
    api = api_ref[...]                                # a^1 .. a^TC
    u = (jnp.dot(xblk.astype(bf16), wut_ref[...],
                 preferred_element_type=jnp.float32) + bu_ref[...])   # (TC, D)

    # ---- phase 1 (flipped half): only the carry entering phase 2 matters and
    # it is an order-free weighted row sum -> no flip, no gate/scan/output.
    @pl.when(c < n_chunks)
    def _():
        h_scr[...] = (api[TC - 1:TC, :] * h_scr[...]
                      + jnp.sum(ape * u, axis=0, keepdims=True))

    # ---- phase 2 (forward half): gated decay scan + output projection.
    @pl.when(c >= n_chunks)
    def _():
        g = (jnp.dot(xblk.astype(bf16), wgt_ref[...],
                     preferred_element_type=jnp.float32) + bgg_ref[...])
        sg = g * _sigmoid(g)                          # silu gate

        # in-chunk inclusive decay scan: Hillis-Steele doubling (XLU/VPU, no MXU)
        w = u
        use_roll = (TC % 8 == 0)
        if use_roll:
            row = jax.lax.broadcasted_iota(jnp.int32, (TC, D), 0)
        k = 1
        while k < TC:
            if use_roll:
                shifted = jnp.where(row >= k,
                                    pltpu.roll(w, shift=k, axis=0), 0.0)
            else:  # tiny, non-sublane-aligned chunk: zero-padded slice shift
                shifted = jnp.concatenate(
                    [jnp.zeros((k, D), jnp.float32), w[:TC - k, :]], axis=0)
            w = w + ape[k:k + 1, :] * shifted
            k *= 2
        h = w + api * h_scr[...]                      # h[t] = w[t] + a^(t+1)*carry

        o_ref[...] = (xblk
                      + jnp.dot((h * sg).astype(bf16), wot_ref[...],
                                preferred_element_type=jnp.float32)
                      + bo_ref[...])
        h_scr[...] = h[TC - 1:TC, :]                  # carry to the next chunk


def mamba_pallas(x2, apow_excl, apow_incl, wut, bu, wgt, bgg, wot, bo,
                 *, time_chunk):
    B, Lp, D = x2.shape
    TC = time_chunk
    assert Lp % TC == 0
    m = Lp // TC                                      # chunks per phase
    rep = lambda b, c: (0, 0)

    def x2_map(b, c):
        # phase 1 (c < m) walks x2 blocks in reverse; phase 2 walks forward.
        return (b, jnp.where(c < m, m - 1 - c, c - m), 0)

    def out_map(b, c):
        # only the forward half is emitted; phase-1 steps park on block 0,
        # which is (re)written by the c == m step before any writeback.
        return (b, jnp.maximum(c - m, 0), 0)

    cost = pl.CostEstimate(
        flops=int(8 * B * Lp * D * D + 30 * B * Lp * D),
        transcendentals=int(B * Lp * D),
        bytes_accessed=int(12 * B * Lp * D + 8 * D * D))

    return pl.pallas_call(
        functools.partial(_mamba_kernel, n_chunks=m),
        out_shape=jax.ShapeDtypeStruct((B, Lp, D), jnp.float32),
        grid=(B, 2 * m),
        in_specs=[
            pl.BlockSpec((None, TC, D), x2_map),   # x2 read twice (no HBM concat)
            pl.BlockSpec((TC, D), rep),            # a^0 .. a^(TC-1)
            pl.BlockSpec((TC, D), rep),            # a^1 .. a^TC
            pl.BlockSpec((D, D), rep),             # wut (bf16)
            pl.BlockSpec((1, D), rep),             # bu
            pl.BlockSpec((D, D), rep),             # wgt (bf16)
            pl.BlockSpec((1, D), rep),             # bg
            pl.BlockSpec((D, D), rep),             # wot (bf16)
            pl.BlockSpec((1, D), rep),             # bo
        ],
        out_specs=pl.BlockSpec((None, TC, D), out_map),
        scratch_shapes=[pltpu.VMEM((1, D), jnp.float32)],   # persistent scan carry
        compiler_params=pltpu.CompilerParams(
            dimension_semantics=("parallel", "arbitrary"),
            vmem_limit_bytes=_VMEM_LIMIT),
        cost_estimate=cost,
    )(x2, apow_excl, apow_incl, wut, bu, wgt, bgg, wot, bo)


# --------------------------------------------------------------------------
# Kernel 3: final_fc (split 2D->D linear) + LayerNorm.  The per-patch mamba
# feature is broadcast to its P rows inside the kernel (no jnp.repeat).
# Both grid axes are parallel (first-token LN is done in plain JAX).
# --------------------------------------------------------------------------
def _final_norm_kernel(x1_ref, x2b_ref, wat_ref, wbt_ref, bfc_ref,
                       g_ref, b_ref, o_ref):
    bf16 = jnp.bfloat16
    x1 = x1_ref[...]                                  # (TP*P, D) bf16
    x2b = x2b_ref[...]                                # (TP, D) f32
    rows, D = x1.shape
    TP = x2b.shape[0]
    P = rows // TP

    a_part = jnp.dot(x1, wat_ref[...], preferred_element_type=jnp.float32)
    b_part = jnp.dot(x2b.astype(bf16), wbt_ref[...],
                     preferred_element_type=jnp.float32)
    nx = (a_part.reshape(TP, P, D) + b_part[:, None, :] + bfc_ref[...]
          ).reshape(rows, D)
    mu = jnp.mean(nx, axis=-1, keepdims=True)
    var = jnp.mean(jnp.square(nx - mu), axis=-1, keepdims=True)
    o_ref[...] = (nx - mu) * jax.lax.rsqrt(var + 1e-5) * g_ref[...] + b_ref[...]


def final_norm_pallas(x1, x2b, wat, wbt, bfc, gamma, beta,
                      *, patch_size, tile_patches):
    B, Lpad, D = x1.shape
    P = patch_size
    Lp = Lpad // P
    TP = tile_patches
    ntiles = Lp // TP
    rep2 = lambda b, t: (0, 0)
    cost = pl.CostEstimate(
        flops=int(2 * B * Lpad * D * D + 2 * B * Lp * D * D + 10 * B * Lpad * D),
        transcendentals=int(B * Lpad),
        bytes_accessed=int(2 * x1.size + 4 * (x2b.size + B * Lpad * D)
                           + 4 * D * D))
    return pl.pallas_call(
        _final_norm_kernel,
        out_shape=jax.ShapeDtypeStruct((B, Lpad, D), jnp.float32),
        grid=(B, ntiles),
        in_specs=[
            pl.BlockSpec((None, TP * P, D), lambda b, t: (b, t, 0)),  # x1 (bf16)
            pl.BlockSpec((None, TP, D), lambda b, t: (b, t, 0)),      # mamba feats
            pl.BlockSpec((D, D), rep2),
            pl.BlockSpec((D, D), rep2),
            pl.BlockSpec((1, D), rep2),
            pl.BlockSpec((1, D), rep2),
            pl.BlockSpec((1, D), rep2),
        ],
        out_specs=pl.BlockSpec((None, TP * P, D), lambda b, t: (b, t, 0)),
        compiler_params=pltpu.CompilerParams(
            dimension_semantics=("parallel", "parallel"),
            vmem_limit_bytes=_VMEM_LIMIT),
        cost_estimate=cost,
    )(x1, x2b, wat, wbt, bfc, gamma, beta)


# --------------------------------------------------------------------------
# Parameters (deterministic, PyTorch-equivalent shapes)
# --------------------------------------------------------------------------
def init_params(key, D, P):
    ks = jax.random.split(key, 16)

    def w(k, shape, scale):
        return jax.random.normal(k, shape, jnp.float32) * scale

    p = {}
    p['w1'] = w(ks[0], (D, D), 1.0 / jnp.sqrt(D))          # Conv1d(D,D,1) weight
    p['b1'] = w(ks[1], (D,), 0.02)
    p['w2'] = w(ks[2], (D, P), 1.0 / jnp.sqrt(P))          # depthwise Conv1d weight
    p['b2'] = w(ks[3], (D,), 0.02)
    p['wf'] = w(ks[4], (D, 2 * D), 1.0 / jnp.sqrt(2 * D))  # f_func
    p['bf'] = w(ks[5], (D,), 0.02)
    p['wg'] = w(ks[6], (D, 2 * D), 1.0 / jnp.sqrt(2 * D))  # fuse_fn
    p['bg'] = w(ks[7], (D,), 0.02)
    p['wfc'] = w(ks[8], (D, 2 * D), 1.0 / jnp.sqrt(2 * D))  # final_fc
    p['bfc'] = w(ks[9], (D,), 0.02)
    p['ln_g'] = jnp.ones((D,), jnp.float32)                # nn.LayerNorm init
    p['ln_b'] = jnp.zeros((D,), jnp.float32)
    # stand-in mamba block
    p['m_wu'] = w(ks[10], (D, D), 1.0 / jnp.sqrt(D))
    p['m_bu'] = w(ks[11], (D,), 0.02)
    p['m_wg'] = w(ks[12], (D, D), 1.0 / jnp.sqrt(D))
    p['m_bg'] = w(ks[13], (D,), 0.02)
    p['m_alog'] = w(ks[14], (D,), 1.0)
    p['m_wo'] = w(ks[15], (D, D), 1.0 / jnp.sqrt(D))
    p['m_bo'] = jnp.zeros((D,), jnp.float32)
    return p


# --------------------------------------------------------------------------
# Forward pass (glue in plain JAX, hot paths in the Pallas kernels above)
# --------------------------------------------------------------------------
def mixed_module_forward(p, x, x_mask, y, y_mask, patch_size):
    P = patch_size
    B, L, D = x.shape
    bf16 = jnp.bfloat16
    r2 = lambda v: v.reshape(1, -1)

    # mask_padding=True: zero out masked positions (in-place in PyTorch)
    x = jnp.where(x_mask[..., None], x, 0.0)
    y = jnp.where(y_mask[..., None], y, 0.0)

    x1 = x[:, 1:]
    L1 = L - 1
    pad = (-L1) % P
    if pad:
        x1 = jnp.pad(x1, ((0, 0), (0, pad), (0, 0)))
    Lpad = L1 + pad
    Lp = Lpad // P
    TP = _choose_patch_tile(Lp, P)

    # activations handed to the kernels in bf16 (they only feed MXU matmuls);
    # halves the dominant HBM read of x1 in kernels 1 and 3.
    x1b = x1.astype(bf16)
    yb = y.astype(bf16)

    # --- fused local_conv + inject_text (kernel 1): nx1 never leaves VMEM ---
    wfgx = jnp.concatenate([p['wf'][:, :D].T, p['wg'][:, :D].T], axis=1)
    x2 = local_inject_pallas(
        x1b, yb,
        p['w1'].T.astype(bf16), r2(p['b1']),
        p['w2'].T, r2(p['b2']),
        wfgx.astype(bf16), p['wf'][:, D:].T.astype(bf16), r2(p['bf']),
        p['wg'][:, D:].T.astype(bf16), r2(p['bg']),
        patch_size=P, tile_patches=TP)                       # (B, Lp, D) f32

    # --- global mamba (kernel 2): concat([flip(x2), x2]) is virtual (x2 read
    # twice via the chunked grid); only the kept forward half is produced.
    # Decay powers are precomputed (cumprod; no exp/log underflow).
    TC = _choose_time_chunk(Lp)
    a = jax.nn.sigmoid(p['m_alog'])[None, :]                 # (1, D)
    apow_incl = jnp.cumprod(jnp.broadcast_to(a, (TC, D)), axis=0)      # a^1..a^TC
    apow_excl = jnp.concatenate([jnp.ones((1, D), jnp.float32),
                                 apow_incl[:TC - 1]], axis=0)          # a^0..a^(TC-1)
    x2b = mamba_pallas(x2, apow_excl, apow_incl,
                       p['m_wu'].T.astype(bf16), r2(p['m_bu']),
                       p['m_wg'].T.astype(bf16), r2(p['m_bg']),
                       p['m_wo'].T.astype(bf16), r2(p['m_bo']),
                       time_chunk=TC)                        # (B, Lp, D) f32

    # --- final_fc + LayerNorm (kernel 3); patch repeat handled in-kernel ---
    out_rest = final_norm_pallas(
        x1b, x2b,
        p['wfc'][:, :D].T.astype(bf16), p['wfc'][:, D:].T.astype(bf16),
        r2(p['bfc']), r2(p['ln_g']), r2(p['ln_b']),
        patch_size=P, tile_patches=TP)                       # (B, Lpad, D)

    # first-token LayerNorm on a (B, 1, D) slab in plain JAX (keeps kernel-3
    # grid fully "parallel" for the two v7x TensorCores).
    x0 = x[:, :1, :]
    mu = jnp.mean(x0, axis=-1, keepdims=True)
    var = jnp.mean(jnp.square(x0 - mu), axis=-1, keepdims=True)
    out0 = (x0 - mu) * jax.lax.rsqrt(var + 1e-5) * p['ln_g'] + p['ln_b']

    out = jnp.concatenate([out0, out_rest[:, :L1]], axis=1)  # (B, L, D)
    return out, y


# --------------------------------------------------------------------------
# Pure-JAX reference (same math & same bf16 matmul-operand precision)
# --------------------------------------------------------------------------
def _mm(a, w_t):
    return jnp.dot(a.astype(jnp.bfloat16), w_t.astype(jnp.bfloat16),
                   preferred_element_type=jnp.float32)


def reference_forward(p, x, x_mask, y, y_mask, patch_size):
    P = patch_size
    B, L, D = x.shape
    x = jnp.where(x_mask[..., None], x, 0.0)
    y = jnp.where(y_mask[..., None], y, 0.0)
    x1 = x[:, 1:]
    L1 = L - 1
    pad = (-L1) % P
    if pad:
        x1 = jnp.pad(x1, ((0, 0), (0, pad), (0, 0)))
    Lpad = L1 + pad
    Lp = Lpad // P
    # the kernels receive y in bf16; mirror that for its elementwise use
    y_eff = y.astype(jnp.bfloat16).astype(jnp.float32)

    # local_conv
    h = jax.nn.relu(_mm(x1.reshape(-1, D), p['w1'].T) + p['b1'])
    nx1 = (h.reshape(B, Lp, P, D) * p['w2'].T[None, None]).sum(axis=2) + p['b2']

    # inject_text
    y_rep = jnp.broadcast_to(y_eff, (B, Lp, D))
    y_hat = (_mm(nx1.reshape(-1, D), p['wf'][:, :D].T)
             + _mm(y_rep.reshape(-1, D), p['wf'][:, D:].T)
             + p['bf']).reshape(B, Lp, D)
    yh = y_rep * _sigmoid(y_hat)
    x2 = (_mm(nx1.reshape(-1, D), p['wg'][:, :D].T)
          + _mm(yh.reshape(-1, D), p['wg'][:, D:].T)
          + p['bg']).reshape(B, Lp, D)

    # stand-in mamba (exact sequential recurrence on concat([flip, fwd]))
    z = jnp.concatenate([jnp.flip(x2, axis=1), x2], axis=1)
    T = 2 * Lp
    u = (_mm(z.reshape(-1, D), p['m_wu'].T) + p['m_bu']).reshape(B, T, D)
    g = (_mm(z.reshape(-1, D), p['m_wg'].T) + p['m_bg']).reshape(B, T, D)
    sg = g * _sigmoid(g)
    a = jax.nn.sigmoid(p['m_alog'])
    hs = jnp.zeros((B, D), jnp.float32)
    ys = []
    for t in range(T):
        hs = a * hs + u[:, t]
        ys.append(hs * sg[:, t])
    Y = jnp.stack(ys, axis=1)
    nz = z + (_mm(Y.reshape(-1, D), p['m_wo'].T) + p['m_bo']).reshape(B, T, D)

    # final fc + LayerNorm
    x2r = jnp.repeat(nz[:, Lp:], P, axis=1)
    nx = (_mm(x1.reshape(-1, D), p['wfc'][:, :D].T)
          + _mm(x2r.reshape(-1, D), p['wfc'][:, D:].T)
          + p['bfc']).reshape(B, Lpad, D)[:, :L1]
    full = jnp.concatenate([x[:, :1], nx], axis=1)
    mu = jnp.mean(full, axis=-1, keepdims=True)
    var = jnp.mean(jnp.square(full - mu), axis=-1, keepdims=True)
    out = (full - mu) * jax.lax.rsqrt(var + 1e-5) * p['ln_g'] + p['ln_b']
    return out, y


if __name__ == "__main__":
    B, L, D, P = 2, 17, 32, 8          # model_dim=32, patch_size=8 -> Lp=2
    key = jax.random.PRNGKey(0)
    kx, ky, kp = jax.random.split(key, 3)
    x = jax.random.normal(kx, (B, L, D), jnp.float32)
    y = jax.random.normal(ky, (B, 1, D), jnp.float32)
    x_mask = jnp.arange(L)[None, :] < jnp.array([L, L - 5])[:, None]   # (B, L)
    y_mask = jnp.array([[True], [False]])                              # (B, 1)
    params = init_params(kp, D, P)

    fwd = jax.jit(functools.partial(mixed_module_forward, patch_size=P))
    out, y_out = fwd(params, x, x_mask, y, y_mask)
    jax.block_until_ready((out, y_out))

    ref_out, ref_y = reference_forward(params, x, x_mask, y, y_mask, P)
    assert out.shape == (B, L, D) and y_out.shape == (B, 1, D)
    assert bool(jnp.all(jnp.isfinite(out)))
    err = float(jnp.max(jnp.abs(out - ref_out)))
    assert bool(jnp.allclose(out, ref_out, atol=1e-2, rtol=1e-2)), err
    assert bool(jnp.allclose(y_out, ref_y))
    print("KERNEL_OK")
</pallas_src>

<mosaic_0001>
module attributes {stable_mosaic.version = 11 : i64} {
  func.func @_mamba_kernel(%arg0: i32, %arg1: i32, %arg2: memref<1x2x32xf32, #tpu.memory_space<vmem>>, %arg3: memref<2x32xf32, #tpu.memory_space<vmem>>, %arg4: memref<2x32xf32, #tpu.memory_space<vmem>>, %arg5: memref<32x32xbf16, #tpu.memory_space<vmem>>, %arg6: memref<1x32xf32, #tpu.memory_space<vmem>>, %arg7: memref<32x32xbf16, #tpu.memory_space<vmem>>, %arg8: memref<1x32xf32, #tpu.memory_space<vmem>>, %arg9: memref<32x32xbf16, #tpu.memory_space<vmem>>, %arg10: memref<1x32xf32, #tpu.memory_space<vmem>>, %arg11: memref<1x2x32xf32, #tpu.memory_space<vmem>>, %arg12: memref<1x32xf32, #tpu.memory_space<vmem>>) attributes {dimension_semantics = [#tpu.dimension_semantics<parallel>, #tpu.dimension_semantics<arbitrary>], iteration_bounds = array<i64: 2, 2>, scalar_prefetch = 0 : i64, scratch_operands = 1 : i64, tpu.core_type = #tpu.core_type<tc>, window_params = [{transform_indices = @transform_0, window_bounds = array<i64: 1, 2, 32>}, {pipeline_mode = #tpu.pipeline_mode<synchronous>, transform_indices = @transform_1, window_bounds = array<i64: 2, 32>}, {pipeline_mode = #tpu.pipeline_mode<synchronous>, transform_indices = @transform_2, window_bounds = array<i64: 2, 32>}, {pipeline_mode = #tpu.pipeline_mode<synchronous>, transform_indices = @transform_3, window_bounds = array<i64: 32, 32>}, {pipeline_mode = #tpu.pipeline_mode<synchronous>, transform_indices = @transform_4, window_bounds = array<i64: 1, 32>}, {pipeline_mode = #tpu.pipeline_mode<synchronous>, transform_indices = @transform_5, window_bounds = array<i64: 32, 32>}, {pipeline_mode = #tpu.pipeline_mode<synchronous>, transform_indices = @transform_6, window_bounds = array<i64: 1, 32>}, {pipeline_mode = #tpu.pipeline_mode<synchronous>, transform_indices = @transform_7, window_bounds = array<i64: 32, 32>}, {pipeline_mode = #tpu.pipeline_mode<synchronous>, transform_indices = @transform_8, window_bounds = array<i64: 1, 32>}, {transform_indices = @transform_9, window_bounds = array<i64: 1, 2, 32>}]} {
    %c0_i32 = arith.constant 0 : i32
    %0 = arith.cmpi eq, %arg1, %c0_i32 : i32
    %1 = arith.extui %0 : i1 to i32
    %c0_i32_0 = arith.constant 0 : i32
    %2 = arith.cmpi ne, %1, %c0_i32_0 : i32
    scf.if %2 {
      %cst_14 = arith.constant 0.000000e+00 : f32
      %19 = vector.broadcast %cst_14 : f32 to vector<1x32xf32>
      %c0_15 = arith.constant 0 : index
      %c0_16 = arith.constant 0 : index
      %20 = vector.load %arg12[%c0_15, %c0_16] : memref<1x32xf32, #tpu.memory_space<vmem>>, vector<1x32xf32>
      tpu.vector_store %arg12[%c0_15, %c0_16], %19 {strides = array<i32>} : memref<1x32xf32, #tpu.memory_space<vmem>>, vector<1x32xf32>,
    } else {
    }
    %c0 = arith.constant 0 : index
    %c0_1 = arith.constant 0 : index
    %c0_2 = arith.constant 0 : index
    %3 = vector.load %arg2[%c0, %c0_1, %c0_2] : memref<1x2x32xf32, #tpu.memory_space<vmem>>, vector<1x2x32xf32>
    %4 = vector.shape_cast %3 : vector<1x2x32xf32> to vector<2x32xf32>
    %c0_3 = arith.constant 0 : index
    %c0_4 = arith.constant 0 : index
    %5 = vector.load %arg3[%c0_3, %c0_4] : memref<2x32xf32, #tpu.memory_space<vmem>>, vector<2x32xf32>
    %c0_5 = arith.constant 0 : index
    %c0_6 = arith.constant 0 : index
    %6 = vector.load %arg4[%c0_5, %c0_6] : memref<2x32xf32, #tpu.memory_space<vmem>>, vector<2x32xf32>
    %7 = arith.truncf %4 : vector<2x32xf32> to vector<2x32xbf16>
    %c0_7 = arith.constant 0 : index
    %c0_8 = arith.constant 0 : index
    %8 = vector.load %arg5[%c0_7, %c0_8] : memref<32x32xbf16, #tpu.memory_space<vmem>>, vector<32x32xbf16>
    %cst = arith.constant dense<0.000000e+00> : vector<2x32xf32>
    %9 = tpu.matmul %7, %8, %cst {dimension_numbers = #tpu.dot_dimension_numbers<[1], [0], [0], [1], [0, 0, 1, 1], [], []>} : vector<2x32xbf16>, vector<32x32xbf16>, vector<2x32xf32> -> vector<2x32xf32>
    %c0_9 = arith.constant 0 : index
    %c0_10 = arith.constant 0 : index
    %10 = vector.load %arg6[%c0_9, %c0_10] : memref<1x32xf32, #tpu.memory_space<vmem>>, vector<1x32xf32>
    %11 = vector.broadcast %10 : vector<1x32xf32> to vector<2x32xf32>
    %12 = arith.addf %9, %11 : vector<2x32xf32>
    %c1_i32 = arith.constant 1 : i32
    %13 = arith.cmpi slt, %arg1, %c1_i32 : i32
    %14 = arith.extui %13 : i1 to i32
    %c0_i32_11 = arith.constant 0 : i32
    %15 = arith.cmpi ne, %14, %c0_i32_11 : i32
    scf.if %15 {
      %19 = vector.extract_strided_slice %6 {offsets = [1, 0], sizes = [1, 32], strides = [1, 1]} : vector<2x32xf32> to vector<1x32xf32>
      %c0_14 = arith.constant 0 : index
      %c0_15 = arith.constant 0 : index
      %20 = vector.load %arg12[%c0_14, %c0_15] : memref<1x32xf32, #tpu.memory_space<vmem>>, vector<1x32xf32>
      %21 = arith.mulf %19, %20 : vector<1x32xf32>
      %22 = arith.mulf %5, %12 : vector<2x32xf32>
      %cst_16 = arith.constant dense<0.000000e+00> : vector<32xf32>
      %23 = vector.multi_reduction <add>, %22, %cst_16 [0] : vector<2x32xf32> to vector<32xf32>
      %24 = vector.shape_cast %23 : vector<32xf32> to vector<1x32xf32>
      %25 = arith.addf %21, %24 : vector<1x32xf32>
      %c0_17 = arith.constant 0 : index
      %c0_18 = arith.constant 0 : index
      %26 = vector.load %arg12[%c0_17, %c0_18] : memref<1x32xf32, #tpu.memory_space<vmem>>, vector<1x32xf32>
      tpu.vector_store %arg12[%c0_17, %c0_18], %25 {strides = array<i32>} : memref<1x32xf32, #tpu.memory_space<vmem>>, vector<1x32xf32>,
    } else {
    }
    %c1_i32_12 = arith.constant 1 : i32
    %16 = arith.cmpi sge, %arg1, %c1_i32_12 : i32
    %17 = arith.extui %16 : i1 to i32
    %c0_i32_13 = arith.constant 0 : i32
    %18 = arith.cmpi ne, %17, %c0_i32_13 : i32
    scf.if %18 {
      %19 = arith.truncf %4 : vector<2x32xf32> to vector<2x32xbf16>
      %c0_14 = arith.constant 0 : index
      %c0_15 = arith.constant 0 : index
      %20 = vector.load %arg7[%c0_14, %c0_15] : memref<32x32xbf16, #tpu.memory_space<vmem>>, vector<32x32xbf16>
      %cst_16 = arith.constant dense<0.000000e+00> : vector<2x32xf32>
      %21 = tpu.matmul %19, %20, %cst_16 {dimension_numbers = #tpu.dot_dimension_numbers<[1], [0], [0], [1], [0, 0, 1, 1], [], []>} : vector<2x32xbf16>, vector<32x32xbf16>, vector<2x32xf32> -> vector<2x32xf32>
      %c0_17 = arith.constant 0 : index
      %c0_18 = arith.constant 0 : index
      %22 = vector.load %arg8[%c0_17, %c0_18] : memref<1x32xf32, #tpu.memory_space<vmem>>, vector<1x32xf32>
      %23 = vector.broadcast %22 : vector<1x32xf32> to vector<2x32xf32>
      %24 = arith.addf %21, %23 : vector<2x32xf32>
      %cst_19 = arith.constant 0.000000e+00 : f32
      %25 = vector.broadcast %cst_19 : f32 to vector<2x32xf32>
      %26 = arith.subf %25, %24 : vector<2x32xf32>
      %27 = math.exp %26 : vector<2x32xf32>
      %cst_20 = arith.constant 1.000000e+00 : f32
      %28 = vector.broadcast %cst_20 : f32 to vector<2x32xf32>
      %29 = arith.addf %28, %27 : vector<2x32xf32>
      %cst_21 = arith.constant 1.000000e+00 : f32
      %30 = vector.broadcast %cst_21 : f32 to vector<2x32xf32>
      %31 = arith.divf %30, %29 : vector<2x32xf32>
      %32 = arith.mulf %24, %31 : vector<2x32xf32>
      %cst_22 = arith.constant 0.000000e+00 : f32
      %33 = vector.broadcast %cst_22 : f32 to vector<1x32xf32>
      %34 = vector.extract_strided_slice %12 {offsets = [0, 0], sizes = [1, 32], strides = [1, 1]} : vector<2x32xf32> to vector<1x32xf32>
      %35 = tpu.concatenate %33, %34 in 0 : vector<1x32xf32>, vector<1x32xf32> -> vector<2x32xf32>
      %36 = vector.extract_strided_slice %5 {offsets = [1, 0], sizes = [1, 32], strides = [1, 1]} : vector<2x32xf32> to vector<1x32xf32>
      %37 = vector.broadcast %36 : vector<1x32xf32> to vector<2x32xf32>
      %38 = arith.mulf %37, %35 : vector<2x32xf32>
      %39 = arith.addf %12, %38 : vector<2x32xf32>
      %c0_23 = arith.constant 0 : index
      %c0_24 = arith.constant 0 : index
      %40 = vector.load %arg12[%c0_23, %c0_24] : memref<1x32xf32, #tpu.memory_space<vmem>>, vector<1x32xf32>
      %41 = vector.broadcast %40 : vector<1x32xf32> to vector<2x32xf32>
      %42 = arith.mulf %6, %41 : vector<2x32xf32>
      %43 = arith.addf %39, %42 : vector<2x32xf32>
      %44 = arith.mulf %43, %32 : vector<2x32xf32>
      %45 = arith.truncf %44 : vector<2x32xf32> to vector<2x32xbf16>
      %c0_25 = arith.constant 0 : index
      %c0_26 = arith.constant 0 : index
      %46 = vector.load %arg9[%c0_25, %c0_26] : memref<32x32xbf16, #tpu.memory_space<vmem>>, vector<32x32xbf16>
      %cst_27 = arith.constant dense<0.000000e+00> : vector<2x32xf32>
      %47 = tpu.matmul %45, %46, %cst_27 {dimension_numbers = #tpu.dot_dimension_numbers<[1], [0], [0], [1], [0, 0, 1, 1], [], []>} : vector<2x32xbf16>, vector<32x32xbf16>, vector<2x32xf32> -> vector<2x32xf32>
      %48 = arith.addf %4, %47 : vector<2x32xf32>
      %c0_28 = arith.constant 0 : index
      %c0_29 = arith.constant 0 : index
      %49 = vector.load %arg10[%c0_28, %c0_29] : memref<1x32xf32, #tpu.memory_space<vmem>>, vector<1x32xf32>
      %50 = vector.broadcast %49 : vector<1x32xf32> to vector<2x32xf32>
      %51 = arith.addf %48, %50 : vector<2x32xf32>
      %c0_30 = arith.constant 0 : index
      %c0_31 = arith.constant 0 : index
      %c0_32 = arith.constant 0 : index
      %52 = vector.load %arg11[%c0_30, %c0_31, %c0_32] : memref<1x2x32xf32, #tpu.memory_space<vmem>>, vector<1x2x32xf32>
      %53 = vector.shape_cast %52 : vector<1x2x32xf32> to vector<2x32xf32>
      %54 = vector.shape_cast %51 : vector<2x32xf32> to vector<1x2x32xf32>
      tpu.vector_store %arg11[%c0_30, %c0_31, %c0_32], %54 {strides = array<i32>} : memref<1x2x32xf32, #tpu.memory_space<vmem>>, vector<1x2x32xf32>,
      %55 = vector.extract_strided_slice %43 {offsets = [1, 0], sizes = [1, 32], strides = [1, 1]} : vector<2x32xf32> to vector<1x32xf32>
      %c0_33 = arith.constant 0 : index
      %c0_34 = arith.constant 0 : index
      %56 = vector.load %arg12[%c0_33, %c0_34] : memref<1x32xf32, #tpu.memory_space<vmem>>, vector<1x32xf32>
      tpu.vector_store %arg12[%c0_33, %c0_34], %55 {strides = array<i32>} : memref<1x32xf32, #tpu.memory_space<vmem>>, vector<1x32xf32>,
    } else {
    }
    return
  }
  func.func @transform_0(%arg0: i32, %arg1: i32) -> (i32, i32, i32) {
    %c1_i32 = arith.constant 1 : i32
    %0 = arith.cmpi slt, %arg1, %c1_i32 : i32
    %c0_i32 = arith.constant 0 : i32
    %1 = arith.subi %c0_i32, %arg1 : i32
    %c1_i32_0 = arith.constant 1 : i32
    %2 = arith.subi %arg1, %c1_i32_0 : i32
    %3 = arith.select %0, %1, %2 : i32
    %c0_i32_1 = arith.constant 0 : i32
    %c0_i32_2 = arith.constant 0 : i32
    return %arg0, %3, %c0_i32_1 : i32, i32, i32
  }
  func.func @transform_1(%arg0: i32, %arg1: i32) -> (i32, i32) {
    %c0_i32 = arith.constant 0 : i32
    %c0_i32_0 = arith.constant 0 : i32
    %c0_i32_1 = arith.constant 0 : i32
    return %c0_i32, %c0_i32_0 : i32, i32
  }
  func.func @transform_2(%arg0: i32, %arg1: i32) -> (i32, i32) {
    %c0_i32 = arith.constant 0 : i32
    %c0_i32_0 = arith.constant 0 : i32
    %c0_i32_1 = arith.constant 0 : i32
    return %c0_i32, %c0_i32_0 : i32, i32
  }
  func.func @transform_3(%arg0: i32, %arg1: i32) -> (i32, i32) {
    %c0_i32 = arith.constant 0 : i32
    %c0_i32_0 = arith.constant 0 : i32
    %c0_i32_1 = arith.constant 0 : i32
    return %c0_i32, %c0_i32_0 : i32, i32
  }
  func.func @transform_4(%arg0: i32, %arg1: i32) -> (i32, i32) {
    %c0_i32 = arith.constant 0 : i32
    %c0_i32_0 = arith.constant 0 : i32
    %c0_i32_1 = arith.constant 0 : i32
    return %c0_i32, %c0_i32_0 : i32, i32
  }
  func.func @transform_5(%arg0: i32, %arg1: i32) -> (i32, i32) {
    %c0_i32 = arith.constant 0 : i32
    %c0_i32_0 = arith.constant 0 : i32
    %c0_i32_1 = arith.constant 0 : i32
    return %c0_i32, %c0_i32_0 : i32, i32
  }
  func.func @transform_6(%arg0: i32, %arg1: i32) -> (i32, i32) {
    %c0_i32 = arith.constant 0 : i32
    %c0_i32_0 = arith.constant 0 : i32
    %c0_i32_1 = arith.constant 0 : i32
    return %c0_i32, %c0_i32_0 : i32, i32
  }
  func.func @transform_7(%arg0: i32, %arg1: i32) -> (i32, i32) {
    %c0_i32 = arith.constant 0 : i32
    %c0_i32_0 = arith.constant 0 : i32
    %c0_i32_1 = arith.constant 0 : i32
    return %c0_i32, %c0_i32_0 : i32, i32
  }
  func.func @transform_8(%arg0: i32, %arg1: i32) -> (i32, i32) {
    %c0_i32 = arith.constant 0 : i32
    %c0_i32_0 = arith.constant 0 : i32
    %c0_i32_1 = arith.constant 0 : i32
    return %c0_i32, %c0_i32_0 : i32, i32
  }
  func.func @transform_9(%arg0: i32, %arg1: i32) -> (i32, i32, i32) {
    %c1_i32 = arith.constant 1 : i32
    %0 = arith.subi %arg1, %c1_i32 : i32
    %c0_i32 = arith.constant 0 : i32
    %1 = arith.maxsi %0, %c0_i32 : i32
    %c0_i32_0 = arith.constant 0 : i32
    %c0_i32_1 = arith.constant 0 : i32
    return %arg0, %1, %c0_i32_0 : i32, i32, i32
  }
}

module attributes {stable_mosaic.version = 11 : i64} {
  func.func @_local_inject_kernel(%arg0: i32, %arg1: i32, %arg2: memref<1x16x32xbf16, #tpu.memory_space<vmem>>, %arg3: memref<1x1x32xbf16, #tpu.memory_space<vmem>>, %arg4: memref<32x32xbf16, #tpu.memory_space<vmem>>, %arg5: memref<1x32xf32, #tpu.memory_space<vmem>>, %arg6: memref<8x32xf32, #tpu.memory_space<vmem>>, %arg7: memref<1x32xf32, #tpu.memory_space<vmem>>, %arg8: memref<32x64xbf16, #tpu.memory_space<vmem>>, %arg9: memref<32x32xbf16, #tpu.memory_space<vmem>>, %arg10: memref<1x32xf32, #tpu.memory_space<vmem>>, %arg11: memref<32x32xbf16, #tpu.memory_space<vmem>>, %arg12: memref<1x32xf32, #tpu.memory_space<vmem>>, %arg13: memref<1x2x32xf32, #tpu.memory_space<vmem>>) attributes {dimension_semantics = [#tpu.dimension_semantics<parallel>, #tpu.dimension_semantics<parallel>], iteration_bounds = array<i64: 2, 1>, scalar_prefetch = 0 : i64, scratch_operands = 0 : i64, tpu.core_type = #tpu.core_type<tc>, window_params = [{transform_indices = @transform_0, window_bounds = array<i64: 1, 16, 32>}, {transform_indices = @transform_1, window_bounds = array<i64: 1, 1, 32>}, {pipeline_mode = #tpu.pipeline_mode<synchronous>, transform_indices = @transform_2, window_bounds = array<i64: 32, 32>}, {pipeline_mode = #tpu.pipeline_mode<synchronous>, transform_indices = @transform_3, window_bounds = array<i64: 1, 32>}, {pipeline_mode = #tpu.pipeline_mode<synchronous>, transform_indices = @transform_4, window_bounds = array<i64: 8, 32>}, {pipeline_mode = #tpu.pipeline_mode<synchronous>, transform_indices = @transform_5, window_bounds = array<i64: 1, 32>}, {pipeline_mode = #tpu.pipeline_mode<synchronous>, transform_indices = @transform_6, window_bounds = array<i64: 32, 64>}, {pipeline_mode = #tpu.pipeline_mode<synchronous>, transform_indices = @transform_7, window_bounds = array<i64: 32, 32>}, {pipeline_mode = #tpu.pipeline_mode<synchronous>, transform_indices = @transform_8, window_bounds = array<i64: 1, 32>}, {pipeline_mode = #tpu.pipeline_mode<synchronous>, transform_indices = @transform_9, window_bounds = array<i64: 32, 32>}, {pipeline_mode = #tpu.pipeline_mode<synchronous>, transform_indices = @transform_10, window_bounds = array<i64: 1, 32>}, {transform_indices = @transform_11, window_bounds = array<i64: 1, 2, 32>}]} {
    %c0 = arith.constant 0 : index
    %c0_0 = arith.constant 0 : index
    %c0_1 = arith.constant 0 : index
    %0 = vector.load %arg2[%c0, %c0_0, %c0_1] : memref<1x16x32xbf16, #tpu.memory_space<vmem>>, vector<1x16x32xbf16>
    %1 = vector.shape_cast %0 : vector<1x16x32xbf16> to vector<16x32xbf16>
    %c0_2 = arith.constant 0 : index
    %c0_3 = arith.constant 0 : index
    %2 = vector.load %arg4[%c0_2, %c0_3] : memref<32x32xbf16, #tpu.memory_space<vmem>>, vector<32x32xbf16>
    %cst = arith.constant dense<0.000000e+00> : vector<16x32xf32>
    %3 = tpu.matmul %1, %2, %cst {dimension_numbers = #tpu.dot_dimension_numbers<[1], [0], [0], [1], [0, 0, 1, 1], [], []>} : vector<16x32xbf16>, vector<32x32xbf16>, vector<16x32xf32> -> vector<16x32xf32>
    %c0_4 = arith.constant 0 : index
    %c0_5 = arith.constant 0 : index
    %4 = vector.load %arg5[%c0_4, %c0_5] : memref<1x32xf32, #tpu.memory_space<vmem>>, vector<1x32xf32>
    %5 = vector.broadcast %4 : vector<1x32xf32> to vector<16x32xf32>
    %6 = arith.addf %3, %5 : vector<16x32xf32>
    %cst_6 = arith.constant 0.000000e+00 : f32
    %7 = vector.broadcast %cst_6 : f32 to vector<16x32xf32>
    %8 = arith.maximumf %6, %7 : vector<16x32xf32>
    %9 = vector.shape_cast %8 : vector<16x32xf32> to vector<2x8x32xf32>
    %10 = vector.extract_strided_slice %9 {offsets = [0, 0, 0], sizes = [2, 1, 32], strides = [1, 1, 1]} : vector<2x8x32xf32> to vector<2x1x32xf32>
    %11 = vector.shape_cast %10 : vector<2x1x32xf32> to vector<2x32xf32>
    %c0_7 = arith.constant 0 : index
    %c0_8 = arith.constant 0 : index
    %12 = vector.load %arg6[%c0_7, %c0_8] : memref<8x32xf32, #tpu.memory_space<vmem>>, vector<1x32xf32>
    %13 = vector.broadcast %12 : vector<1x32xf32> to vector<2x32xf32>
    %14 = arith.mulf %11, %13 : vector<2x32xf32>
    %15 = vector.extract_strided_slice %9 {offsets = [0, 1, 0], sizes = [2, 1, 32], strides = [1, 1, 1]} : vector<2x8x32xf32> to vector<2x1x32xf32>
    %16 = vector.shape_cast %15 : vector<2x1x32xf32> to vector<2x32xf32>
    %c1 = arith.constant 1 : index
    %c0_9 = arith.constant 0 : index
    %17 = vector.load %arg6[%c1, %c0_9] : memref<8x32xf32, #tpu.memory_space<vmem>>, vector<1x32xf32>
    %18 = vector.broadcast %17 : vector<1x32xf32> to vector<2x32xf32>
    %19 = arith.mulf %16, %18 : vector<2x32xf32>
    %20 = arith.addf %14, %19 : vector<2x32xf32>
    %21 = vector.extract_strided_slice %9 {offsets = [0, 2, 0], sizes = [2, 1, 32], strides = [1, 1, 1]} : vector<2x8x32xf32> to vector<2x1x32xf32>
    %22 = vector.shape_cast %21 : vector<2x1x32xf32> to vector<2x32xf32>
    %c2 = arith.constant 2 : index
    %c0_10 = arith.constant 0 : index
    %23 = vector.load %arg6[%c2, %c0_10] : memref<8x32xf32, #tpu.memory_space<vmem>>, vector<1x32xf32>
    %24 = vector.broadcast %23 : vector<1x32xf32> to vector<2x32xf32>
    %25 = arith.mulf %22, %24 : vector<2x32xf32>
    %26 = arith.addf %20, %25 : vector<2x32xf32>
    %27 = vector.extract_strided_slice %9 {offsets = [0, 3, 0], sizes = [2, 1, 32], strides = [1, 1, 1]} : vector<2x8x32xf32> to vector<2x1x32xf32>
    %28 = vector.shape_cast %27 : vector<2x1x32xf32> to vector<2x32xf32>
    %c3 = arith.constant 3 : index
    %c0_11 = arith.constant 0 : index
    %29 = vector.load %arg6[%c3, %c0_11] : memref<8x32xf32, #tpu.memory_space<vmem>>, vector<1x32xf32>
    %30 = vector.broadcast %29 : vector<1x32xf32> to vector<2x32xf32>
    %31 = arith.mulf %28, %30 : vector<2x32xf32>
    %32 = arith.addf %26, %31 : vector<2x32xf32>
    %33 = vector.extract_strided_slice %9 {offsets = [0, 4, 0], sizes = [2, 1, 32], strides = [1, 1, 1]} : vector<2x8x32xf32> to vector<2x1x32xf32>
    %34 = vector.shape_cast %33 : vector<2x1x32xf32> to vector<2x32xf32>
    %c4 = arith.constant 4 : index
    %c0_12 = arith.constant 0 : index
    %35 = vector.load %arg6[%c4, %c0_12] : memref<8x32xf32, #tpu.memory_space<vmem>>, vector<1x32xf32>
    %36 = vector.broadcast %35 : vector<1x32xf32> to vector<2x32xf32>
    %37 = arith.mulf %34, %36 : vector<2x32xf32>
    %38 = arith.addf %32, %37 : vector<2x32xf32>
    %39 = vector.extract_strided_slice %9 {offsets = [0, 5, 0], sizes = [2, 1, 32], strides = [1, 1, 1]} : vector<2x8x32xf32> to vector<2x1x32xf32>
    %40 = vector.shape_cast %39 : vector<2x1x32xf32> to vector<2x32xf32>
    %c5 = arith.constant 5 : index
    %c0_13 = arith.constant 0 : index
    %41 = vector.load %arg6[%c5, %c0_13] : memref<8x32xf32, #tpu.memory_space<vmem>>, vector<1x32xf32>
    %42 = vector.broadcast %41 : vector<1x32xf32> to vector<2x32xf32>
    %43 = arith.mulf %40, %42 : vector<2x32xf32>
    %44 = arith.addf %38, %43 : vector<2x32xf32>
    %45 = vector.extract_strided_slice %9 {offsets = [0, 6, 0], sizes = [2, 1, 32], strides = [1, 1, 1]} : vector<2x8x32xf32> to vector<2x1x32xf32>
    %46 = vector.shape_cast %45 : vector<2x1x32xf32> to vector<2x32xf32>
    %c6 = arith.constant 6 : index
    %c0_14 = arith.constant 0 : index
    %47 = vector.load %arg6[%c6, %c0_14] : memref<8x32xf32, #tpu.memory_space<vmem>>, vector<1x32xf32>
    %48 = vector.broadcast %47 : vector<1x32xf32> to vector<2x32xf32>
    %49 = arith.mulf %46, %48 : vector<2x32xf32>
    %50 = arith.addf %44, %49 : vector<2x32xf32>
    %51 = vector.extract_strided_slice %9 {offsets = [0, 7, 0], sizes = [2, 1, 32], strides = [1, 1, 1]} : vector<2x8x32xf32> to vector<2x1x32xf32>
    %52 = vector.shape_cast %51 : vector<2x1x32xf32> to vector<2x32xf32>
    %c7 = arith.constant 7 : index
    %c0_15 = arith.constant 0 : index
    %53 = vector.load %arg6[%c7, %c0_15] : memref<8x32xf32, #tpu.memory_space<vmem>>, vector<1x32xf32>
    %54 = vector.broadcast %53 : vector<1x32xf32> to vector<2x32xf32>
    %55 = arith.mulf %52, %54 : vector<2x32xf32>
    %56 = arith.addf %50, %55 : vector<2x32xf32>
    %c0_16 = arith.constant 0 : index
    %c0_17 = arith.constant 0 : index
    %57 = vector.load %arg7[%c0_16, %c0_17] : memref<1x32xf32, #tpu.memory_space<vmem>>, vector<1x32xf32>
    %58 = vector.broadcast %57 : vector<1x32xf32> to vector<2x32xf32>
    %59 = arith.addf %56, %58 : vector<2x32xf32>
    %60 = arith.truncf %59 : vector<2x32xf32> to vector<2x32xbf16>
    %c0_18 = arith.constant 0 : index
    %c0_19 = arith.constant 0 : index
    %61 = vector.load %arg8[%c0_18, %c0_19] : memref<32x64xbf16, #tpu.memory_space<vmem>>, vector<32x64xbf16>
    %cst_20 = arith.constant dense<0.000000e+00> : vector<2x64xf32>
    %62 = tpu.matmul %60, %61, %cst_20 {dimension_numbers = #tpu.dot_dimension_numbers<[1], [0], [0], [1], [0, 0, 1, 1], [], []>} : vector<2x32xbf16>, vector<32x64xbf16>, vector<2x64xf32> -> vector<2x64xf32>
    %c0_21 = arith.constant 0 : index
    %c0_22 = arith.constant 0 : index
    %c0_23 = arith.constant 0 : index
    %63 = vector.load %arg3[%c0_21, %c0_22, %c0_23] : memref<1x1x32xbf16, #tpu.memory_space<vmem>>, vector<1x1x32xbf16>
    %64 = vector.shape_cast %63 : vector<1x1x32xbf16> to vector<1x32xbf16>
    %65 = vector.extract_strided_slice %62 {offsets = [0, 0], sizes = [2, 32], strides = [1, 1]} : vector<2x64xf32> to vector<2x32xf32>
    %c0_24 = arith.constant 0 : index
    %c0_25 = arith.constant 0 : index
    %66 = vector.load %arg9[%c0_24, %c0_25] : memref<32x32xbf16, #tpu.memory_space<vmem>>, vector<32x32xbf16>
    %cst_26 = arith.constant dense<0.000000e+00> : vector<1x32xf32>
    %67 = tpu.matmul %64, %66, %cst_26 {dimension_numbers = #tpu.dot_dimension_numbers<[1], [0], [0], [1], [0, 0, 1, 1], [], []>} : vector<1x32xbf16>, vector<32x32xbf16>, vector<1x32xf32> -> vector<1x32xf32>
    %68 = vector.broadcast %67 : vector<1x32xf32> to vector<2x32xf32>
    %69 = arith.addf %65, %68 : vector<2x32xf32>
    %c0_27 = arith.constant 0 : index
    %c0_28 = arith.constant 0 : index
    %70 = vector.load %arg10[%c0_27, %c0_28] : memref<1x32xf32, #tpu.memory_space<vmem>>, vector<1x32xf32>
    %71 = vector.broadcast %70 : vector<1x32xf32> to vector<2x32xf32>
    %72 = arith.addf %69, %71 : vector<2x32xf32>
    %73 = arith.extf %64 : vector<1x32xbf16> to vector<1x32xf32>
    %cst_29 = arith.constant 0.000000e+00 : f32
    %74 = vector.broadcast %cst_29 : f32 to vector<2x32xf32>
    %75 = arith.subf %74, %72 : vector<2x32xf32>
    %76 = math.exp %75 : vector<2x32xf32>
    %cst_30 = arith.constant 1.000000e+00 : f32
    %77 = vector.broadcast %cst_30 : f32 to vector<2x32xf32>
    %78 = arith.addf %77, %76 : vector<2x32xf32>
    %cst_31 = arith.constant 1.000000e+00 : f32
    %79 = vector.broadcast %cst_31 : f32 to vector<2x32xf32>
    %80 = arith.divf %79, %78 : vector<2x32xf32>
    %81 = vector.broadcast %73 : vector<1x32xf32> to vector<2x32xf32>
    %82 = arith.mulf %81, %80 : vector<2x32xf32>
    %83 = vector.extract_strided_slice %62 {offsets = [0, 32], sizes = [2, 32], strides = [1, 1]} : vector<2x64xf32> to vector<2x32xf32>
    %84 = arith.truncf %82 : vector<2x32xf32> to vector<2x32xbf16>
    %c0_32 = arith.constant 0 : index
    %c0_33 = arith.constant 0 : index
    %85 = vector.load %arg11[%c0_32, %c0_33] : memref<32x32xbf16, #tpu.memory_space<vmem>>, vector<32x32xbf16>
    %cst_34 = arith.constant dense<0.000000e+00> : vector<2x32xf32>
    %86 = tpu.matmul %84, %85, %cst_34 {dimension_numbers = #tpu.dot_dimension_numbers<[1], [0], [0], [1], [0, 0, 1, 1], [], []>} : vector<2x32xbf16>, vector<32x32xbf16>, vector<2x32xf32> -> vector<2x32xf32>
    %87 = arith.addf %83, %86 : vector<2x32xf32>
    %c0_35 = arith.constant 0 : index
    %c0_36 = arith.constant 0 : index
    %88 = vector.load %arg12[%c0_35, %c0_36] : memref<1x32xf32, #tpu.memory_space<vmem>>, vector<1x32xf32>
    %89 = vector.broadcast %88 : vector<1x32xf32> to vector<2x32xf32>
    %90 = arith.addf %87, %89 : vector<2x32xf32>
    %c0_37 = arith.constant 0 : index
    %c0_38 = arith.constant 0 : index
    %c0_39 = arith.constant 0 : index
    %91 = vector.load %arg13[%c0_37, %c0_38, %c0_39] : memref<1x2x32xf32, #tpu.memory_space<vmem>>, vector<1x2x32xf32>
    %92 = vector.shape_cast %91 : vector<1x2x32xf32> to vector<2x32xf32>
    %93 = vector.shape_cast %90 : vector<2x32xf32> to vector<1x2x32xf32>
    tpu.vector_store %arg13[%c0_37, %c0_38, %c0_39], %93 {strides = array<i32>} : memref<1x2x32xf32, #tpu.memory_space<vmem>>, vector<1x2x32xf32>,
    return
  }
  func.func @transform_0(%arg0: i32, %arg1: i32) -> (i32, i32, i32) {
    %c0_i32 = arith.constant 0 : i32
    %c0_i32_0 = arith.constant 0 : i32
    return %arg0, %arg1, %c0_i32 : i32, i32, i32
  }
  func.func @transform_1(%arg0: i32, %arg1: i32) -> (i32, i32, i32) {
    %c0_i32 = arith.constant 0 : i32
    %c0_i32_0 = arith.constant 0 : i32
    %c0_i32_1 = arith.constant 0 : i32
    return %arg0, %c0_i32, %c0_i32_0 : i32, i32, i32
  }
  func.func @transform_2(%arg0: i32, %arg1: i32) -> (i32, i32) {
    %c0_i32 = arith.constant 0 : i32
    %c0_i32_0 = arith.constant 0 : i32
    %c0_i32_1 = arith.constant 0 : i32
    return %c0_i32, %c0_i32_0 : i32, i32
  }
  func.func @transform_3(%arg0: i32, %arg1: i32) -> (i32, i32) {
    %c0_i32 = arith.constant 0 : i32
    %c0_i32_0 = arith.constant 0 : i32
    %c0_i32_1 = arith.constant 0 : i32
    return %c0_i32, %c0_i32_0 : i32, i32
  }
  func.func @transform_4(%arg0: i32, %arg1: i32) -> (i32, i32) {
    %c0_i32 = arith.constant 0 : i32
    %c0_i32_0 = arith.constant 0 : i32
    %c0_i32_1 = arith.constant 0 : i32
    return %c0_i32, %c0_i32_0 : i32, i32
  }
  func.func @transform_5(%arg0: i32, %arg1: i32) -> (i32, i32) {
    %c0_i32 = arith.constant 0 : i32
    %c0_i32_0 = arith.constant 0 : i32
    %c0_i32_1 = arith.constant 0 : i32
    return %c0_i32, %c0_i32_0 : i32, i32
  }
  func.func @transform_6(%arg0: i32, %arg1: i32) -> (i32, i32) {
    %c0_i32 = arith.constant 0 : i32
    %c0_i32_0 = arith.constant 0 : i32
    %c0_i32_1 = arith.constant 0 : i32
    return %c0_i32, %c0_i32_0 : i32, i32
  }
  func.func @transform_7(%arg0: i32, %arg1: i32) -> (i32, i32) {
    %c0_i32 = arith.constant 0 : i32
    %c0_i32_0 = arith.constant 0 : i32
    %c0_i32_1 = arith.constant 0 : i32
    return %c0_i32, %c0_i32_0 : i32, i32
  }
  func.func @transform_8(%arg0: i32, %arg1: i32) -> (i32, i32) {
    %c0_i32 = arith.constant 0 : i32
    %c0_i32_0 = arith.constant 0 : i32
    %c0_i32_1 = arith.constant 0 : i32
    return %c0_i32, %c0_i32_0 : i32, i32
  }
  func.func @transform_9(%arg0: i32, %arg1: i32) -> (i32, i32) {
    %c0_i32 = arith.constant 0 : i32
    %c0_i32_0 = arith.constant 0 : i32
    %c0_i32_1 = arith.constant 0 : i32
    return %c0_i32, %c0_i32_0 : i32, i32
  }
  func.func @transform_10(%arg0: i32, %arg1: i32) -> (i32, i32) {
    %c0_i32 = arith.constant 0 : i32
    %c0_i32_0 = arith.constant 0 : i32
    %c0_i32_1 = arith.constant 0 : i32
    return %c0_i32, %c0_i32_0 : i32, i32
  }
  func.func @transform_11(%arg0: i32, %arg1: i32) -> (i32, i32, i32) {
    %c0_i32 = arith.constant 0 : i32
    %c0_i32_0 = arith.constant 0 : i32
    return %arg0, %arg1, %c0_i32 : i32, i32, i32
  }
}

module attributes {stable_mosaic.version = 11 : i64} {
  func.func @_final_norm_kernel(%arg0: i32, %arg1: i32, %arg2: memref<1x16x32xbf16, #tpu.memory_space<vmem>>, %arg3: memref<1x2x32xf32, #tpu.memory_space<vmem>>, %arg4: memref<32x32xbf16, #tpu.memory_space<vmem>>, %arg5: memref<32x32xbf16, #tpu.memory_space<vmem>>, %arg6: memref<1x32xf32, #tpu.memory_space<vmem>>, %arg7: memref<1x32xf32, #tpu.memory_space<vmem>>, %arg8: memref<1x32xf32, #tpu.memory_space<vmem>>, %arg9: memref<1x16x32xf32, #tpu.memory_space<vmem>>) attributes {dimension_semantics = [#tpu.dimension_semantics<parallel>, #tpu.dimension_semantics<parallel>], iteration_bounds = array<i64: 2, 1>, scalar_prefetch = 0 : i64, scratch_operands = 0 : i64, tpu.core_type = #tpu.core_type<tc>, window_params = [{transform_indices = @transform_0, window_bounds = array<i64: 1, 16, 32>}, {transform_indices = @transform_1, window_bounds = array<i64: 1, 2, 32>}, {pipeline_mode = #tpu.pipeline_mode<synchronous>, transform_indices = @transform_2, window_bounds = array<i64: 32, 32>}, {pipeline_mode = #tpu.pipeline_mode<synchronous>, transform_indices = @transform_3, window_bounds = array<i64: 32, 32>}, {pipeline_mode = #tpu.pipeline_mode<synchronous>, transform_indices = @transform_4, window_bounds = array<i64: 1, 32>}, {pipeline_mode = #tpu.pipeline_mode<synchronous>, transform_indices = @transform_5, window_bounds = array<i64: 1, 32>}, {pipeline_mode = #tpu.pipeline_mode<synchronous>, transform_indices = @transform_6, window_bounds = array<i64: 1, 32>}, {transform_indices = @transform_7, window_bounds = array<i64: 1, 16, 32>}]} {
    %c0 = arith.constant 0 : index
    %c0_0 = arith.constant 0 : index
    %c0_1 = arith.constant 0 : index
    %0 = vector.load %arg2[%c0, %c0_0, %c0_1] : memref<1x16x32xbf16, #tpu.memory_space<vmem>>, vector<1x16x32xbf16>
    %1 = vector.shape_cast %0 : vector<1x16x32xbf16> to vector<16x32xbf16>
    %c0_2 = arith.constant 0 : index
    %c0_3 = arith.constant 0 : index
    %c0_4 = arith.constant 0 : index
    %2 = vector.load %arg3[%c0_2, %c0_3, %c0_4] : memref<1x2x32xf32, #tpu.memory_space<vmem>>, vector<1x2x32xf32>
    %3 = vector.shape_cast %2 : vector<1x2x32xf32> to vector<2x32xf32>
    %c0_5 = arith.constant 0 : index
    %c0_6 = arith.constant 0 : index
    %4 = vector.load %arg4[%c0_5, %c0_6] : memref<32x32xbf16, #tpu.memory_space<vmem>>, vector<32x32xbf16>
    %cst = arith.constant dense<0.000000e+00> : vector<16x32xf32>
    %5 = tpu.matmul %1, %4, %cst {dimension_numbers = #tpu.dot_dimension_numbers<[1], [0], [0], [1], [0, 0, 1, 1], [], []>} : vector<16x32xbf16>, vector<32x32xbf16>, vector<16x32xf32> -> vector<16x32xf32>
    %6 = arith.truncf %3 : vector<2x32xf32> to vector<2x32xbf16>
    %c0_7 = arith.constant 0 : index
    %c0_8 = arith.constant 0 : index
    %7 = vector.load %arg5[%c0_7, %c0_8] : memref<32x32xbf16, #tpu.memory_space<vmem>>, vector<32x32xbf16>
    %cst_9 = arith.constant dense<0.000000e+00> : vector<2x32xf32>
    %8 = tpu.matmul %6, %7, %cst_9 {dimension_numbers = #tpu.dot_dimension_numbers<[1], [0], [0], [1], [0, 0, 1, 1], [], []>} : vector<2x32xbf16>, vector<32x32xbf16>, vector<2x32xf32> -> vector<2x32xf32>
    %9 = vector.shape_cast %5 : vector<16x32xf32> to vector<2x8x32xf32>
    %10 = vector.shape_cast %8 : vector<2x32xf32> to vector<2x1x32xf32>
    %11 = vector.broadcast %10 : vector<2x1x32xf32> to vector<2x8x32xf32>
    %12 = arith.addf %9, %11 : vector<2x8x32xf32>
    %c0_10 = arith.constant 0 : index
    %c0_11 = arith.constant 0 : index
    %13 = vector.load %arg6[%c0_10, %c0_11] : memref<1x32xf32, #tpu.memory_space<vmem>>, vector<1x32xf32>
    %14 = vector.shape_cast %13 : vector<1x32xf32> to vector<1x1x32xf32>
    %15 = vector.broadcast %14 : vector<1x1x32xf32> to vector<2x8x32xf32>
    %16 = arith.addf %12, %15 : vector<2x8x32xf32>
    %17 = vector.shape_cast %16 : vector<2x8x32xf32> to vector<16x32xf32>
    %cst_12 = arith.constant dense<0.000000e+00> : vector<16xf32>
    %18 = vector.multi_reduction <add>, %17, %cst_12 [1] : vector<16x32xf32> to vector<16xf32>
    %19 = vector.shape_cast %18 : vector<16xf32> to vector<16x1xf32>
    %cst_13 = arith.constant 3.200000e+01 : f32
    %20 = vector.broadcast %cst_13 : f32 to vector<16x1xf32>
    %21 = arith.divf %19, %20 : vector<16x1xf32>
    %22 = vector.broadcast %21 : vector<16x1xf32> to vector<16x32xf32>
    %23 = arith.subf %17, %22 : vector<16x32xf32>
    %24 = arith.mulf %23, %23 : vector<16x32xf32>
    %cst_14 = arith.constant dense<0.000000e+00> : vector<16xf32>
    %25 = vector.multi_reduction <add>, %24, %cst_14 [1] : vector<16x32xf32> to vector<16xf32>
    %26 = vector.shape_cast %25 : vector<16xf32> to vector<16x1xf32>
    %cst_15 = arith.constant 3.200000e+01 : f32
    %27 = vector.broadcast %cst_15 : f32 to vector<16x1xf32>
    %28 = arith.divf %26, %27 : vector<16x1xf32>
    %29 = vector.broadcast %21 : vector<16x1xf32> to vector<16x32xf32>
    %30 = arith.subf %17, %29 : vector<16x32xf32>
    %cst_16 = arith.constant 9.99999974E-6 : f32
    %31 = vector.broadcast %cst_16 : f32 to vector<16x1xf32>
    %32 = arith.addf %28, %31 : vector<16x1xf32>
    %33 = math.rsqrt %32 : vector<16x1xf32>
    %34 = vector.broadcast %33 : vector<16x1xf32> to vector<16x32xf32>
    %35 = arith.mulf %30, %34 : vector<16x32xf32>
    %c0_17 = arith.constant 0 : index
    %c0_18 = arith.constant 0 : index
    %36 = vector.load %arg7[%c0_17, %c0_18] : memref<1x32xf32, #tpu.memory_space<vmem>>, vector<1x32xf32>
    %37 = vector.broadcast %36 : vector<1x32xf32> to vector<16x32xf32>
    %38 = arith.mulf %35, %37 : vector<16x32xf32>
    %c0_19 = arith.constant 0 : index
    %c0_20 = arith.constant 0 : index
    %39 = vector.load %arg8[%c0_19, %c0_20] : memref<1x32xf32, #tpu.memory_space<vmem>>, vector<1x32xf32>
    %40 = vector.broadcast %39 : vector<1x32xf32> to vector<16x32xf32>
    %41 = arith.addf %38, %40 : vector<16x32xf32>
    %c0_21 = arith.constant 0 : index
    %c0_22 = arith.constant 0 : index
    %c0_23 = arith.constant 0 : index
    %42 = vector.load %arg9[%c0_21, %c0_22, %c0_23] : memref<1x16x32xf32, #tpu.memory_space<vmem>>, vector<1x16x32xf32>
    %43 = vector.shape_cast %42 : vector<1x16x32xf32> to vector<16x32xf32>
    %44 = vector.shape_cast %41 : vector<16x32xf32> to vector<1x16x32xf32>
    tpu.vector_store %arg9[%c0_21, %c0_22, %c0_23], %44 {strides = array<i32>} : memref<1x16x32xf32, #tpu.memory_space<vmem>>, vector<1x16x32xf32>,
    return
  }
  func.func @transform_0(%arg0: i32, %arg1: i32) -> (i32, i32, i32) {
    %c0_i32 = arith.constant 0 : i32
    %c0_i32_0 = arith.constant 0 : i32
    return %arg0, %arg1, %c0_i32 : i32, i32, i32
  }
  func.func @transform_1(%arg0: i32, %arg1: i32) -> (i32, i32, i32) {
    %c0_i32 = arith.constant 0 : i32
    %c0_i32_0 = arith.constant 0 : i32
    return %arg0, %arg1, %c0_i32 : i32, i32, i32
  }
  func.func @transform_2(%arg0: i32, %arg1: i32) -> (i32, i32) {
    %c0_i32 = arith.constant 0 : i32
    %c0_i32_0 = arith.constant 0 : i32
    %c0_i32_1 = arith.constant 0 : i32
    return %c0_i32, %c0_i32_0 : i32, i32
  }
  func.func @transform_3(%arg0: i32, %arg1: i32) -> (i32, i32) {
    %c0_i32 = arith.constant 0 : i32
    %c0_i32_0 = arith.constant 0 : i32
    %c0_i32_1 = arith.constant 0 : i32
    return %c0_i32, %c0_i32_0 : i32, i32
  }
  func.func @transform_4(%arg0: i32, %arg1: i32) -> (i32, i32) {
    %c0_i32 = arith.constant 0 : i32
    %c0_i32_0 = arith.constant 0 : i32
    %c0_i32_1 = arith.constant 0 : i32
    return %c0_i32, %c0_i32_0 : i32, i32
  }
  func.func @transform_5(%arg0: i32, %arg1: i32) -> (i32, i32) {
    %c0_i32 = arith.constant 0 : i32
    %c0_i32_0 = arith.constant 0 : i32
    %c0_i32_1 = arith.constant 0 : i32
    return %c0_i32, %c0_i32_0 : i32, i32
  }
  func.func @transform_6(%arg0: i32, %arg1: i32) -> (i32, i32) {
    %c0_i32 = arith.constant 0 : i32
    %c0_i32_0 = arith.constant 0 : i32
    %c0_i32_1 = arith.constant 0 : i32
    return %c0_i32, %c0_i32_0 : i32, i32
  }
  func.func @transform_7(%arg0: i32, %arg1: i32) -> (i32, i32, i32) {
    %c0_i32 = arith.constant 0 : i32
    %c0_i32_0 = arith.constant 0 : i32
    return %arg0, %arg1, %c0_i32 : i32, i32, i32
  }
}

</mosaic_0001>

<llo_original>
// kernel: mixed_module_forward.5
$region0: #{mixed_module_forward.5}
  #allocation0 [shape = 'u32[]', space=smem, size = 0x4, offset = 0x4, fixed_abs, tag = 'smem constant byte address 0x4 - core index']
  #allocation1 [shape = 'u32[144,128]{1,0:T(1,128)}', space=vmem, size = 0x12000, scoped, tag = 'internal scratch']
  %s0 = inlined_call_operand.vmem [shape: bf16[2,16,32], index: 0, kind: input, shape index: {}]
  %s1 = inlined_call_operand.vmem [shape: f32[2,2,32], index: 1, kind: input, shape index: {}]
  %s2 = inlined_call_operand.vmem [shape: bf16[32,32], index: 2, kind: input, shape index: {}]
  %s3 = inlined_call_operand.vmem [shape: bf16[32,32], index: 3, kind: input, shape index: {}]
  %s4 = inlined_call_operand.vmem [shape: f32[1,32], index: 4, kind: input, shape index: {}]
  %s5 = inlined_call_operand.vmem [shape: f32[1,32], index: 5, kind: input, shape index: {}]
  %s6 = inlined_call_operand.vmem [shape: f32[1,32], index: 6, kind: input, shape index: {}]
  %s7 = inlined_call_operand.vmem [shape: f32[2,16,32], index: 7, kind: output, shape index: {}]
  %s8 = sld [smem:[#allocation0]]
  $region61: #{mixed_module_forward.5} parent=0
    _
  %s10 = ssub.s32 1, %s8
  %s11 = scalar_select 0, %s10, %s8
  loop: start=0, step=1, limit=4
  $region2: #{mixed_module_forward.5} parent=0 // loop_pre_header
    _
  $region3: #{mixed_module_forward.5} parent=0 // loop_header
    %s13 = sphi 0, %s17
    %p14 = scmp.ge.s32.totalorder %s13, 4
    %s20 = sphi 0, %s32
    %s21 = sphi 0, %s28
    %s22 = sphi 0, %s20
    %s23 = sphi 0, %s21
    %s24 = sphi 0, %s22
    %s25 = sphi 0, %s23
    %s37 = sphi 0, %s39
    %s40 = sphi 0, %s37
    %s41 = sphi 0, %s40
    %s57 = sphi 0, %s41
    %s65 = sphi 0, %s67
    %s68 = sphi 0, %s65
    %s69 = sphi 0, %s68
    %s85 = sphi 0, %s69
    %s89 = sphi 0, %s89
    %s91 = sphi 0, %s89
    %s92 = sphi 0, %s91
    %s106 = sphi 0, %s92
    %s110 = sphi 0, %s110
    %s112 = sphi 0, %s110
    %s113 = sphi 0, %s112
    %s127 = sphi 0, %s113
    %s131 = sphi 0, %s131
    %s133 = sphi 0, %s131
    %s134 = sphi 0, %s133
    %s148 = sphi 0, %s134
    %s152 = sphi 0, %s152
    %s154 = sphi 0, %s152
    %s155 = sphi 0, %s154
    %s169 = sphi 0, %s155
    %s173 = sphi 0, %s173
    %s175 = sphi 0, %s173
    %s176 = sphi 0, %s175
    %s190 = sphi 0, %s176
    %s198 = sphi 0, %s200
    %s201 = sphi 0, %s198
    %s202 = sphi 0, %s201
    %s218 = sphi 0, %s202
  $region4: #{mixed_module_forward.5} parent=0 // loop_header_branch
    %16 = sbr.rel (%p14) target = $region8
  $region5: #{mixed_module_forward.5} parent=0 // loop_body
    %s18 = ssub.s32 %s13, 1
    %s19 = ssub.s32 %s13, 2
    %s26 = sadd.s32 1, %s21
    %p27 = scmp.ge.s32.totalorder %s26, 1
    %s28 = scalar_select %p27, 0, %s26
    %s29 = sadd.s32 1, %s20
    %s30 = scalar_select %p27, %s29, %s20
    %p31 = scmp.ge.s32.totalorder %s30, 2
    %s32 = scalar_select %p31, 0, %s30
    %s33 = ssub.s32 %s20, %s32
    %s34 = ssub.s32 %s21, %s28
    %s35 = sor.u32 %s33, %s34
    %p36 = scmp.eq.s32.totalorder %s35, 0
    %s38 = sadd.s32 %s37, 1
    %s39 = scalar_select %p36, %s37, %s38
    %p42 = pneg %p36
    %p43 = scmp.eq.s32.totalorder %s13, 1
    %p44 = por %p42, %p43
    %p45 = scmp.ne.s32.totalorder %s37, %s40
    %p46 = scmp.eq.s32.totalorder %s13, 0
    %p47 = por %p45, %p46
    %p48 = scmp.ne.s32.totalorder %s37, %s40
    %p49 = scmp.eq.s32.totalorder %s18, 1
    %p50 = por %p48, %p49
    %p51 = scmp.ne.s32.totalorder %s40, %s41
    %p52 = scmp.eq.s32.totalorder %s18, 0
    %p53 = por %p51, %p52
    %p54 = scmp.ne.s32.totalorder %s40, %s41
    %p55 = scmp.eq.s32.totalorder %s19, 1
    %p56 = por %p54, %p55
    %p58 = scmp.ne.s32.totalorder %s41, %s57
    %p59 = scmp.eq.s32.totalorder %s19, 0
    %p60 = por %p58, %p59
    %s61 = ssub.s32 %s20, %s32
    %s62 = ssub.s32 %s21, %s28
    %s63 = sor.u32 %s61, %s62
    %p64 = scmp.eq.s32.totalorder %s63, 0
    %s66 = sadd.s32 %s65, 1
    %s67 = scalar_select %p64, %s65, %s66
    %p70 = pneg %p64
    %p71 = scmp.eq.s32.totalorder %s13, 1
    %p72 = por %p70, %p71
    %p73 = scmp.ne.s32.totalorder %s65, %s68
    %p74 = scmp.eq.s32.totalorder %s13, 0
    %p75 = por %p73, %p74
    %p76 = scmp.ne.s32.totalorder %s65, %s68
    %p77 = scmp.eq.s32.totalorder %s18, 1
    %p78 = por %p76, %p77
    %p79 = scmp.ne.s32.totalorder %s68, %s69
    %p80 = scmp.eq.s32.totalorder %s18, 0
    %p81 = por %p79, %p80
    %p82 = scmp.ne.s32.totalorder %s68, %s69
    %p83 = scmp.eq.s32.totalorder %s19, 1
    %p84 = por %p82, %p83
    %p86 = scmp.ne.s32.totalorder %s69, %s85
    %p87 = scmp.eq.s32.totalorder %s19, 0
    %p88 = por %p86, %p87
    %s90 = sadd.s32 %s89, 1
    %p93 = scmp.eq.s32.totalorder %s13, 1
    %p94 = scmp.ne.s32.totalorder %s89, %s91
    %p95 = scmp.eq.s32.totalorder %s13, 0
    %p96 = por %p94, %p95
    %p97 = scmp.ne.s32.totalorder %s89, %s91
    %p98 = scmp.eq.s32.totalorder %s18, 1
    %p99 = por %p97, %p98
    %p100 = scmp.ne.s32.totalorder %s91, %s92
    %p101 = scmp.eq.s32.totalorder %s18, 0
    %p102 = por %p100, %p101
    %p103 = scmp.ne.s32.totalorder %s91, %s92
    %p104 = scmp.eq.s32.totalorder %s19, 1
    %p105 = por %p103, %p104
    %p107 = scmp.ne.s32.totalorder %s92, %s106
    %p108 = scmp.eq.s32.totalorder %s19, 0
    %p109 = por %p107, %p108
    %s111 = sadd.s32 %s110, 1
    %p114 = scmp.eq.s32.totalorder %s13, 1
    %p115 = scmp.ne.s32.totalorder %s110, %s112
    %p116 = scmp.eq.s32.totalorder %s13, 0
    %p117 = por %p115, %p116
    %p118 = scmp.ne.s32.totalorder %s110, %s112
    %p119 = scmp.eq.s32.totalorder %s18, 1
    %p120 = por %p118, %p119
    %p121 = scmp.ne.s32.totalorder %s112, %s113
    %p122 = scmp.eq.s32.totalorder %s18, 0
    %p123 = por %p121, %p122
    %p124 = scmp.ne.s32.totalorder %s112, %s113
    %p125 = scmp.eq.s32.totalorder %s19, 1
    %p126 = por %p124, %p125
    %p128 = scmp.ne.s32.totalorder %s113, %s127
    %p129 = scmp.eq.s32.totalorder %s19, 0
    %p130 = por %p128, %p129
    %s132 = sadd.s32 %s131, 1
    %p135 = scmp.eq.s32.totalorder %s13, 1
    %p136 = scmp.ne.s32.totalorder %s131, %s133
    %p137 = scmp.eq.s32.totalorder %s13, 0
    %p138 = por %p136, %p137
    %p139 = scmp.ne.s32.totalorder %s131, %s133
    %p140 = scmp.eq.s32.totalorder %s18, 1
    %p141 = por %p139, %p140
    %p142 = scmp.ne.s32.totalorder %s133, %s134
    %p143 = scmp.eq.s32.totalorder %s18, 0
    %p144 = por %p142, %p143
    %p145 = scmp.ne.s32.totalorder %s133, %s134
    %p146 = scmp.eq.s32.totalorder %s19, 1
    %p147 = por %p145, %p146
    %p149 = scmp.ne.s32.totalorder %s134, %s148
    %p150 = scmp.eq.s32.totalorder %s19, 0
    %p151 = por %p149, %p150
    %s153 = sadd.s32 %s152, 1
    %p156 = scmp.eq.s32.totalorder %s13, 1
    %p157 = scmp.ne.s32.totalorder %s152, %s154
    %p158 = scmp.eq.s32.totalorder %s13, 0
    %p159 = por %p157, %p158
    %p160 = scmp.ne.s32.totalorder %s152, %s154
    %p161 = scmp.eq.s32.totalorder %s18, 1
    %p162 = por %p160, %p161
    %p163 = scmp.ne.s32.totalorder %s154, %s155
    %p164 = scmp.eq.s32.totalorder %s18, 0
    %p165 = por %p163, %p164
    %p166 = scmp.ne.s32.totalorder %s154, %s155
    %p167 = scmp.eq.s32.totalorder %s19, 1
    %p168 = por %p166, %p167
    %p170 = scmp.ne.s32.totalorder %s155, %s169
    %p171 = scmp.eq.s32.totalorder %s19, 0
    %p172 = por %p170, %p171
    %s174 = sadd.s32 %s173, 1
    %p177 = scmp.eq.s32.totalorder %s13, 1
    %p178 = scmp.ne.s32.totalorder %s173, %s175
    %p179 = scmp.eq.s32.totalorder %s13, 0
    %p180 = por %p178, %p179
    %p181 = scmp.ne.s32.totalorder %s173, %s175
    %p182 = scmp.eq.s32.totalorder %s18, 1
    %p183 = por %p181, %p182
    %p184 = scmp.ne.s32.totalorder %s175, %s176
    %p185 = scmp.eq.s32.totalorder %s18, 0
    %p186 = por %p184, %p185
    %p187 = scmp.ne.s32.totalorder %s175, %s176
    %p188 = scmp.eq.s32.totalorder %s19, 1
    %p189 = por %p187, %p188
    %p191 = scmp.ne.s32.totalorder %s176, %s190
    %p192 = scmp.eq.s32.totalorder %s19, 0
    %p193 = por %p191, %p192
    %s194 = ssub.s32 %s20, %s32
    %s195 = ssub.s32 %s21, %s28
    %s196 = sor.u32 %s194, %s195
    %p197 = scmp.eq.s32.totalorder %s196, 0
    %s199 = sadd.s32 %s198, 1
    %s200 = scalar_select %p197, %s198, %s199
    %p203 = pneg %p197
    %p204 = scmp.eq.s32.totalorder %s13, 1
    %p205 = por %p203, %p204
    %p206 = scmp.ne.s32.totalorder %s198, %s201
    %p207 = scmp.eq.s32.totalorder %s13, 0
    %p208 = por %p206, %p207
    %p209 = scmp.ne.s32.totalorder %s198, %s201
    %p210 = scmp.eq.s32.totalorder %s18, 1
    %p211 = por %p209, %p210
    %p212 = scmp.ne.s32.totalorder %s201, %s202
    %p213 = scmp.eq.s32.totalorder %s18, 0
    %p214 = por %p212, %p213
    %p215 = scmp.ne.s32.totalorder %s201, %s202
    %p216 = scmp.eq.s32.totalorder %s19, 1
    %p217 = por %p215, %p216
    %p219 = scmp.ne.s32.totalorder %s202, %s218
    %p220 = scmp.eq.s32.totalorder %s19, 0
    %p221 = por %p219, %p220
    %p222 = scmp.le.s32.totalorder 1, %s13
    %p223 = scmp.lt.s32.totalorder %s13, 3
    %p224 = pnand %p222, %p223
    %p225 = pneg %p224
    // Predicated region
    $region9: #{mixed_module_forward.5} parent=5 // pred_check
      _
    $region10: #{mixed_module_forward.5} parent=5 // pred_check_branch
      %227 = sbr.rel (%p224) target = $region12
    $region11: #{mixed_module_forward.5} parent=5 // pred_region
      %s228 = ssub.s32 %s13, 1
      // Predicated region
      $region13: #{mixed_module_forward.5} parent=11 // pred_check
        %p229 = pneg %p102
      $region14: #{mixed_module_forward.5} parent=11 // pred_check_branch
        %231 = sbr.rel (%p229) target = $region16
      $region15: #{mixed_module_forward.5} parent=11 // pred_region
        _
      $region16: #{mixed_module_forward.5} parent=11 // pred_fallthru
        _
      // Predicated region
      $region17: #{mixed_module_forward.5} parent=11 // pred_check
        %p232 = pneg %p123
      $region18: #{mixed_module_forward.5} parent=11 // pred_check_branch
        %234 = sbr.rel (%p232) target = $region20
      $region19: #{mixed_module_forward.5} parent=11 // pred_region
        _
      $region20: #{mixed_module_forward.5} parent=11 // pred_fallthru
        _
      // Predicated region
      $region21: #{mixed_module_forward.5} parent=11 // pred_check
        %p235 = pneg %p144
      $region22: #{mixed_module_forward.5} parent=11 // pred_check_branch
        %237 = sbr.rel (%p235) target = $region24
      $region23: #{mixed_module_forward.5} parent=11 // pred_region
        _
      $region24: #{mixed_module_forward.5} parent=11 // pred_fallthru
        _
      // Predicated region
      $region25: #{mixed_module_forward.5} parent=11 // pred_check
        %p238 = pneg %p165
      $region26: #{mixed_module_forward.5} parent=11 // pred_check_branch
        %240 = sbr.rel (%p238) target = $region28
      $region27: #{mixed_module_forward.5} parent=11 // pred_region
        _
      $region28: #{mixed_module_forward.5} parent=11 // pred_fallthru
        _
      // Predicated region
      $region29: #{mixed_module_forward.5} parent=11 // pred_check
        %p241 = pneg %p186
      $region30: #{mixed_module_forward.5} parent=11 // pred_check_branch
        %243 = sbr.rel (%p241) target = $region32
      $region31: #{mixed_module_forward.5} parent=11 // pred_region
        _
      $region32: #{mixed_module_forward.5} parent=11 // pred_fallthru
        _
    $region12: #{mixed_module_forward.5} parent=5 // pred_fallthru
      _
    %p244 = scmp.lt.s32.totalorder %s13, 2
    // Predicated region
    $region33: #{mixed_module_forward.5} parent=5 // pred_check
      %p245 = pneg %p244
    $region34: #{mixed_module_forward.5} parent=5 // pred_check_branch
      %247 = sbr.rel (%p245) target = $region36
    $region35: #{mixed_module_forward.5} parent=5 // pred_region
      // Predicated region
      $region37: #{mixed_module_forward.5} parent=35 // pred_check
        %p248 = pneg %p47
      $region38: #{mixed_module_forward.5} parent=35 // pred_check_branch
        %250 = sbr.rel (%p248) target = $region40
      $region39: #{mixed_module_forward.5} parent=35 // pred_region
        %s251 = smul.u32 2, %s21
        %p252 = scmp.lt.s32.totalorder %s20, 1
        %s253 = scalar_select %p252, %s20, 1
        %p254 = scmp.lt.s32.totalorder %s251, 1
        %s255 = scalar_select %p254, %s251, 1
        %s256 = smul.addr %s253, 2
        %s257 = sadd.s32 %s255, %s256
        %s258 = smul.addr %s257, 4
        %s259 = scalar_lea.vmem %s0, %s258
        %s260 = smul.u32 2, %s21
      $region40: #{mixed_module_forward.5} parent=35 // pred_fallthru
        _
      // Predicated region
      $region41: #{mixed_module_forward.5} parent=35 // pred_check
        %p261 = pneg %p75
      $region42: #{mixed_module_forward.5} parent=35 // pred_check_branch
        %263 = sbr.rel (%p261) target = $region44
      $region43: #{mixed_module_forward.5} parent=35 // pred_region
        %p264 = scmp.lt.s32.totalorder %s20, 1
        %s265 = scalar_select %p264, %s20, 1
        %p266 = scmp.lt.s32.totalorder %s21, 0
        %s267 = scalar_select %p266, %s21, 0
        %s268 = sadd.s32 %s267, %s265
        %s269 = smul.addr %s268, 2
        %s270 = scalar_lea.vmem %s1, %s269
      $region44: #{mixed_module_forward.5} parent=35 // pred_fallthru
        _
    $region36: #{mixed_module_forward.5} parent=5 // pred_fallthru
      _
    %p271 = scmp.le.s32.totalorder 1, %s13
    %p272 = scmp.lt.s32.totalorder %s13, 3
    %p273 = pnand %p271, %p272
    %p274 = pneg %p273
    // Predicated region
    $region45: #{mixed_module_forward.5} parent=5 // pred_check
      _
    $region46: #{mixed_module_forward.5} parent=5 // pred_check_branch
      %276 = sbr.rel (%p273) target = $region48
    $region47: #{mixed_module_forward.5} parent=5 // pred_region
      %s277 = ssub.s32 %s13, 1
      %s278 = smul.u32 2, %s23
      %p279 = scmp.lt.s32.totalorder %s22, 1
      %s280 = scalar_select %p279, %s22, 1
      %p281 = scmp.lt.s32.totalorder %s278, 1
      %s282 = scalar_select %p281, %s278, 1
      %s283 = smul.addr %s280, 2
      %s284 = sadd.s32 %s282, %s283
      %s285 = smul.addr %s284, 4
      %s286 = scalar_lea.vmem %s0, %s285
      %p287 = pneg %p53
      %p288 = pneg %p50
      %p289 = scmp.lt.s32.totalorder %s22, 1
      %s290 = scalar_select %p289, %s22, 1
      %p291 = scmp.lt.s32.totalorder %s23, 0
      %s292 = scalar_select %p291, %s23, 0
      %s293 = sadd.s32 %s292, %s290
      %s294 = smul.addr %s293, 2
      %s295 = scalar_lea.vmem %s1, %s294
      %p296 = pneg %p81
      %p297 = pneg %p78
      %p298 = pneg %p102
      %p299 = pneg %p99
      %p300 = pneg %p123
      %p301 = pneg %p120
      %p302 = pneg %p144
      %p303 = pneg %p141
      %p304 = pneg %p165
      %p305 = pneg %p162
      %p306 = pneg %p186
      %p307 = pneg %p183
      %p308 = pneg %p214
      %p309 = pneg %p211
      %s310 = smul.u32 2, %s23
      %p311 = scmp.lt.s32.totalorder %s22, 1
      %s312 = scalar_select %p311, %s22, 1
      %p313 = scmp.lt.s32.totalorder %s310, 1
      %s314 = scalar_select %p313, %s310, 1
      %s315 = smul.addr %s312, 2
      %s316 = sadd.s32 %s314, %s315
      %s317 = smul.addr %s316, 8
      %s318 = scalar_lea.vmem %s7, %s317
      %s319 = smul.u32 2, %s23
      %p320 = scmp.lt.s32.totalorder %s22, 1
      %s321 = scalar_select %p320, %s22, 1
      %p322 = scmp.lt.s32.totalorder %s319, 1
      %s323 = scalar_select %p322, %s319, 1
      %s324 = smul.addr %s321, 2
      %s325 = sadd.s32 %s323, %s324
      %s326 = smul.addr %s325, 4
      %s327 = scalar_lea.vmem %s0, %s326
      %s328 = smul.u32 2, %s23
      %p329 = scmp.lt.s32.totalorder %s22, 1
      %s330 = scalar_select %p329, %s22, 1
      %p331 = scmp.lt.s32.totalorder %s23, 0
      %s332 = scalar_select %p331, %s23, 0
      %s333 = sadd.s32 %s332, %s330
      %s334 = smul.addr %s333, 2
      %s335 = scalar_lea.vmem %s1, %s334
      %s336 = smul.u32 2, %s23
      %p337 = scmp.lt.s32.totalorder %s22, 1
      %s338 = scalar_select %p337, %s22, 1
      %p339 = scmp.lt.s32.totalorder %s336, 1
      %s340 = scalar_select %p339, %s336, 1
      %s341 = smul.addr %s338, 2
      %s342 = sadd.s32 %s340, %s341
      %s343 = smul.addr %s342, 8
      %s344 = scalar_lea.vmem %s7, %s343
      %s345 = smul.u32 2, %s23
      %v347 = vld [vmem:[%s327] sm:$0xf]
      %v348 = vld [vmem:[%s327 + $0x4] sm:$0xf]
      %v349 = vld [vmem:[%s335] sm:$0x3]
      %v350 = vld [vmem:[%s2] sm:$0xf]
      %v351 = vld [vmem:[%s2 + $0x4] sm:$0xf]
      %v352 = vld [vmem:[%s2 + $0x8] sm:$0xf]
      %v353 = vld [vmem:[%s2 + $0xc] sm:$0xf]
      %v356 = vunpack.c.l.b16 %v347
      %v357 = vunpack.c.l.b16 %v348
      %v358 = vpack.c.b16 %v357, %v356
      %v363 = vunpack.c.l.b16 %v350
      %v364 = vunpack.c.l.b16 %v351
      %v365 = vunpack.c.l.b16 %v352
      %v366 = vunpack.c.l.b16 %v353
      %v367 = vpack.c.b16 %v364, %v363
      %v368 = vpack.c.b16 %v366, %v365
      %vm371 = vcmask 261120
      %v373 = vsel %vm371, %v358, 0
      %375 = vmatprep.subr.bf16.mxu0 0
      %376 = vmatpush1.bf16.msra.mxu0 %v367
      %377 = vmatprep.subr.bf16.mxu0 0
      %378 = vmatpush1.bf16.msra.mxu0 %v368
      %379 = vmatprep.subr.bf16.mxu0 0
      %380 = vmatpush1.bf16.msra.mxu0 0
      %381 = vmatprep.subr.bf16.mxu0 0
      %382 = vmatpush1.bf16.msra.mxu0 0
      %383 = vmatprep.subr.bf16.mxu0 0
      %384 = vmatpush1.bf16.msra.mxu0 0
      %385 = vmatprep.subr.bf16.mxu0 0
      %386 = vmatpush1.bf16.msra.mxu0 0
      %387 = vmatprep.subr.bf16.mxu0 0
      %388 = vmatpush1.bf16.msra.mxu0 0
      %389 = vmatprep.subr.bf16.mxu0 0
      %390 = vmatpush1.bf16.msra.mxu0 0
      %391 = vmatprep.subr.bf16.mxu0 0
      %392 = vmatpush1.bf16.msra.mxu0 0
      %393 = vmatprep.subr.bf16.mxu0 0
      %394 = vmatpush1.bf16.msra.mxu0 0
      %395 = vmatprep.subr.bf16.mxu0 0
      %396 = vmatpush1.bf16.msra.mxu0 0
      %397 = vmatprep.subr.bf16.mxu0 0
      %398 = vmatpush1.bf16.msra.mxu0 0
      %399 = vmatprep.subr.bf16.mxu0 0
      %400 = vmatpush1.bf16.msra.mxu0 0
      %401 = vmatprep.subr.bf16.mxu0 0
      %402 = vmatpush1.bf16.msra.mxu0 0
      %403 = vmatprep.subr.bf16.mxu0 0
      %404 = vmatpush1.bf16.msra.mxu0 0
      %405 = vmatprep.subr.bf16.mxu0 0
      %406 = vmatpush1.bf16.msra.mxu0 0
      %407 = vmatprep.mubr.bf16.mxu0 0
      %408 = vmatmul.mubr.bf16.gmra.mrb[0].mxu0 %v373
      %v409 = vpop.f32.mrb[0].mxu0
      %v410 = vadd.f32 0.0, %v409
      %v411 = vpop.f32.mrb[0].mxu0
      %v412 = vpop.f32.mrb[0].mxu0
      %v413 = vadd.f32 0.0, %v412
      %v414 = vpop.f32.mrb[0].mxu0
      %415 = vdwg.mxu0
      %v416 = vpack.c.bf16 %v349, %v349
      %v417 = vld [vmem:[%s3] sm:$0xf]
      %v418 = vld [vmem:[%s3 + $0x4] sm:$0xf]
      %v419 = vld [vmem:[%s3 + $0x8] sm:$0xf]
      %v420 = vld [vmem:[%s3 + $0xc] sm:$0xf]
      %v425 = vunpack.c.l.b16 %v417
      %v426 = vunpack.c.l.b16 %v418
      %v427 = vunpack.c.l.b16 %v419
      %v428 = vunpack.c.l.b16 %v420
      %v429 = vpack.c.b16 %v426, %v425
      %v430 = vpack.c.b16 %v428, %v427
      %v434 = vsel %vm371, %v416, 0
      %436 = vmatprep.subr.bf16.mxu0 0
      %437 = vmatpush1.bf16.msra.mxu0 %v429
      %438 = vmatprep.subr.bf16.mxu0 0
      %439 = vmatpush1.bf16.msra.mxu0 %v430
      %440 = vmatprep.subr.bf16.mxu0 0
      %441 = vmatpush1.bf16.msra.mxu0 0
      %442 = vmatprep.subr.bf16.mxu0 0
      %443 = vmatpush1.bf16.msra.mxu0 0
      %444 = vmatprep.subr.bf16.mxu0 0
      %445 = vmatpush1.bf16.msra.mxu0 0
      %446 = vmatprep.subr.bf16.mxu0 0
      %447 = vmatpush1.bf16.msra.mxu0 0
      %448 = vmatprep.subr.bf16.mxu0 0
      %449 = vmatpush1.bf16.msra.mxu0 0
      %450 = vmatprep.subr.bf16.mxu0 0
      %451 = vmatpush1.bf16.msra.mxu0 0
      %452 = vmatprep.subr.bf16.mxu0 0
      %453 = vmatpush1.bf16.msra.mxu0 0
      %454 = vmatprep.subr.bf16.mxu0 0
      %455 = vmatpush1.bf16.msra.mxu0 0
      %456 = vmatprep.subr.bf16.mxu0 0
      %457 = vmatpush1.bf16.msra.mxu0 0
      %458 = vmatprep.subr.bf16.mxu0 0
      %459 = vmatpush1.bf16.msra.mxu0 0
      %460 = vmatprep.subr.bf16.mxu0 0
      %461 = vmatpush1.bf16.msra.mxu0 0
      %462 = vmatprep.subr.bf16.mxu0 0
      %463 = vmatpush1.bf16.msra.mxu0 0
      %464 = vmatprep.subr.bf16.mxu0 0
      %465 = vmatpush1.bf16.msra.mxu0 0
      %466 = vmatprep.subr.bf16.mxu0 0
      %467 = vmatpush1.bf16.msra.mxu0 0
      %468 = vmatprep.mubr.bf16.mxu0 0
      %469 = vmatmul.mubr.bf16.gmra.mrb[0].mxu0 %v434
      %v470 = vpop.f32.mrb[0].mxu0
      %v471 = vadd.f32 0.0, %v470
      %v472 = vpop.f32.mrb[0].mxu0
      %v473 = vpop.f32.mrb[0].mxu0
      %v474 = vpop.f32.mrb[0].mxu0
      %475 = vdwg.mxu0
      %v478 = vunpack.c.l.s4 1966171168
      %v479 = vunpack.c.0.s8 %v478
      %v480 = vlaneseq
      %v481 = vshrl.u32 %v480, 7
      %v482 = vsub.s32 %v479, %v481
      %v483 = vrot.slane %v471, %v482
      %v484 = vcombine.high %v483, %v483
      %v486 = vunpack.c.l.s4 1966171168
      %v487 = vunpack.c.0.s8 %v486
      %v488 = vlaneseq
      %v489 = vshrl.u32 %v488, 7
      %v490 = vsub.s32 %v487, %v489
      %v491 = vrot.slane %v483, %v490
      %v493 = vunpack.c.l.s4 1966171168
      %v494 = vunpack.c.0.s8 %v493
      %v495 = vlaneseq
      %v496 = vshrl.u32 %v495, 7
      %v497 = vsub.s32 %v494, %v496
      %v498 = vrot.slane %v484, %v497
      %v499 = vlaneseq
      %v500 = vshrl.u32 %v499, 7
      %v501 = vsub.s32 0, %v500
      %v502 = vrot.slane %v491, %v501
      %v503 = vlaneseq
      %v504 = vshrl.u32 %v503, 7
      %v505 = vsub.s32 0, %v504
      %v506 = vrot.slane %v498, %v505
      %v509 = vadd.f32 %v410, %v502
      %v510 = vadd.f32 %v413, %v506
      %v511 = vld [vmem:[%s4] sm:$0x1]
      %v513 = vlaneseq
      %v514 = vshrl.u32 %v513, 7
      %v515 = vsub.s32 0, %v514
      %v516 = vrot.slane %v511, %v515
      %v518 = vadd.f32 %v509, %v516
      %v519 = vadd.f32 %v510, %v516
      %v520 = vsel %vm371, %v518, 0.0
      %521 = vadd.xlane.f32.xlu0 %v520
      %v522 = vpop.xlane.xlu0 %521
      %v523 = vsel %vm371, %v519, 0.0
      %524 = vadd.xlane.f32.xlu0 %v523
      %v525 = vpop.xlane.xlu0 %524
      %v526 = vrcp.pop 32.0
      %v527 = vmul.f32 %v522, %v526
      %v528 = vmul.f32 %v525, %v526
      %v529 = vsub.f32 %v518, %v527
      %v530 = vsub.f32 %v519, %v528
      %v531 = vmul.f32 %v529, %v529
      %v532 = vmul.f32 %v530, %v530
      %v533 = vsel %vm371, %v531, 0.0
      %534 = vadd.xlane.f32.xlu0 %v533
      %v535 = vpop.xlane.xlu0 %534
      %v536 = vsel %vm371, %v532, 0.0
      %537 = vadd.xlane.f32.xlu0 %v536
      %v538 = vpop.xlane.xlu0 %537
      %v539 = vmul.f32 %v535, %v526
      %v540 = vmul.f32 %v538, %v526
      %v541 = vadd.f32 %v539, 1e-05
      %v542 = vadd.f32 %v540, 1e-05
      %v543 = vrsqrt.pop %v541
      %v544 = vrsqrt.pop %v542
      %v545 = vmul.f32 %v529, %v543
      %v546 = vmul.f32 %v530, %v544
      %v547 = vld [vmem:[%s5] sm:$0x1]
      %v549 = vlaneseq
      %v550 = vshrl.u32 %v549, 7
      %v551 = vsub.s32 0, %v550
      %v552 = vrot.slane %v547, %v551
      %v554 = vmul.f32 %v545, %v552
      %v555 = vmul.f32 %v546, %v552
      %v556 = vld [vmem:[%s6] sm:$0x1]
      %v558 = vlaneseq
      %v559 = vshrl.u32 %v558, 7
      %v560 = vsub.s32 0, %v559
      %v561 = vrot.slane %v556, %v560
      %v563 = vadd.f32 %v554, %v561
      %v564 = vadd.f32 %v555, %v561
      %565 = vst.msk [vmem:[%s344] sm:$0xff] %vm371, %v563
      %566 = vst.msk [vmem:[%s344 + $0x8] sm:$0xff] %vm371, %v564
      %s567 = smul.u32 2, %s23
      %p568 = scmp.lt.s32.totalorder %s22, 1
      %s569 = scalar_select %p568, %s22, 1
      %p570 = scmp.lt.s32.totalorder %s567, 1
      %s571 = scalar_select %p570, %s567, 1
      %s572 = smul.addr %s569, 2
      %s573 = sadd.s32 %s571, %s572
      %s574 = smul.addr %s573, 8
      %s575 = scalar_lea.vmem %s7, %s574
      // Predicated region
      $region49: #{mixed_module_forward.5} parent=47 // pred_check
        %p576 = pneg %p211
      $region50: #{mixed_module_forward.5} parent=47 // pred_check_branch
        %578 = sbr.rel (%p576) target = $region52
      $region51: #{mixed_module_forward.5} parent=47 // pred_region
        %s579 = smul.u32 2, %s23
      $region52: #{mixed_module_forward.5} parent=47 // pred_fallthru
        _
    $region48: #{mixed_module_forward.5} parent=5 // pred_fallthru
      _
    %p580 = scmp.le.s32.totalorder 2, %s13
    // Predicated region
    $region53: #{mixed_module_forward.5} parent=5 // pred_check
      %p581 = pneg %p580
    $region54: #{mixed_module_forward.5} parent=5 // pred_check_branch
      %583 = sbr.rel (%p581) target = $region56
    $region55: #{mixed_module_forward.5} parent=5 // pred_region
      %s584 = ssub.s32 %s13, 2
      // Predicated region
      $region57: #{mixed_module_forward.5} parent=55 // pred_check
        %p585 = pneg %p217
      $region58: #{mixed_module_forward.5} parent=55 // pred_check_branch
        %587 = sbr.rel (%p585) target = $region60
      $region59: #{mixed_module_forward.5} parent=55 // pred_region
        %s588 = smul.u32 2, %s25
        %p589 = scmp.lt.s32.totalorder %s24, 1
        %s590 = scalar_select %p589, %s24, 1
        %p591 = scmp.lt.s32.totalorder %s588, 1
        %s592 = scalar_select %p591, %s588, 1
        %s593 = smul.addr %s590, 2
        %s594 = sadd.s32 %s592, %s593
        %s595 = smul.addr %s594, 8
        %s596 = scalar_lea.vmem %s7, %s595
      $region60: #{mixed_module_forward.5} parent=55 // pred_fallthru
        _
    $region56: #{mixed_module_forward.5} parent=5 // pred_fallthru
      _
  $region6: #{mixed_module_forward.5} parent=0 // loop_footer
    %s17 = sadd.s32 1, %s13
  $region7: #{mixed_module_forward.5} parent=0 // loop_footer_branch
    %12 = sbr.rel target = $region3
  $region8: #{mixed_module_forward.5} parent=0 // loop_exit
    _

// kernel: mixed_module_forward.4
$region0: #{mixed_module_forward.4}
  #allocation0 [shape = 'u32[]', space=smem, size = 0x4, offset = 0x4, fixed_abs, tag = 'smem constant byte address 0x4 - core index']
  #allocation1 [shape = 'u32[144,128]{1,0:T(1,128)}', space=vmem, size = 0x12000, scoped, tag = 'internal scratch']
  #allocation2 [shape = 'f32[1,32]{1,0:T(1,128)}', space=vmem, size = 0x200, scoped, tag = 'scratch operand']
  %s0 = inlined_call_operand.vmem [shape: f32[2,2,32], index: 0, kind: input, shape index: {}]
  %s1 = inlined_call_operand.vmem [shape: f32[2,32], index: 1, kind: input, shape index: {}]
  %s2 = inlined_call_operand.vmem [shape: f32[2,32], index: 2, kind: input, shape index: {}]
  %s3 = inlined_call_operand.vmem [shape: bf16[32,32], index: 3, kind: input, shape index: {}]
  %s4 = inlined_call_operand.vmem [shape: f32[1,32], index: 4, kind: input, shape index: {}]
  %s5 = inlined_call_operand.vmem [shape: bf16[32,32], index: 5, kind: input, shape index: {}]
  %s6 = inlined_call_operand.vmem [shape: f32[1,32], index: 6, kind: input, shape index: {}]
  %s7 = inlined_call_operand.vmem [shape: bf16[32,32], index: 7, kind: input, shape index: {}]
  %s8 = inlined_call_operand.vmem [shape: f32[1,32], index: 8, kind: input, shape index: {}]
  %s9 = inlined_call_operand.vmem [shape: f32[2,2,32], index: 9, kind: output, shape index: {}]
  %s10 = sld [smem:[#allocation0]]
  $region81: #{mixed_module_forward.4} parent=0
    _
  %s12 = ssub.s32 1, %s10
  %s13 = scalar_select 0, %s12, %s10
  loop: start=0, step=1, limit=6
  $region2: #{mixed_module_forward.4} parent=0 // loop_pre_header
    _
  $region3: #{mixed_module_forward.4} parent=0 // loop_header
    %s15 = sphi 0, %s19
    %p16 = scmp.ge.s32.totalorder %s15, 6
    %s22 = sphi 0, %s34
    %s23 = sphi 0, %s30
    %s24 = sphi 0, %s22
    %s25 = sphi 0, %s23
    %s26 = sphi 0, %s24
    %s27 = sphi 0, %s25
    %s47 = sphi 0, %s49
    %s50 = sphi 0, %s47
    %s51 = sphi 0, %s50
    %s67 = sphi 0, %s51
    %s71 = sphi 0, %s71
    %s73 = sphi 0, %s71
    %s74 = sphi 0, %s73
    %s88 = sphi 0, %s74
    %s92 = sphi 0, %s92
    %s94 = sphi 0, %s92
    %s95 = sphi 0, %s94
    %s109 = sphi 0, %s95
    %s113 = sphi 0, %s113
    %s115 = sphi 0, %s113
    %s116 = sphi 0, %s115
    %s130 = sphi 0, %s116
    %s134 = sphi 0, %s134
    %s136 = sphi 0, %s134
    %s137 = sphi 0, %s136
    %s151 = sphi 0, %s137
    %s155 = sphi 0, %s155
    %s157 = sphi 0, %s155
    %s158 = sphi 0, %s157
    %s172 = sphi 0, %s158
    %s176 = sphi 0, %s176
    %s178 = sphi 0, %s176
    %s179 = sphi 0, %s178
    %s193 = sphi 0, %s179
    %s197 = sphi 0, %s197
    %s199 = sphi 0, %s197
    %s200 = sphi 0, %s199
    %s214 = sphi 0, %s200
    %s218 = sphi 0, %s218
    %s220 = sphi 0, %s218
    %s221 = sphi 0, %s220
    %s235 = sphi 0, %s221
    %s249 = sphi 0, %s251
    %s252 = sphi 0, %s249
    %s253 = sphi 0, %s252
    %s269 = sphi 0, %s253
  $region4: #{mixed_module_forward.4} parent=0 // loop_header_branch
    %18 = sbr.rel (%p16) target = $region8
  $region5: #{mixed_module_forward.4} parent=0 // loop_body
    %s20 = ssub.s32 %s15, 1
    %s21 = ssub.s32 %s15, 2
    %s28 = sadd.s32 1, %s23
    %p29 = scmp.ge.s32.totalorder %s28, 2
    %s30 = scalar_select %p29, 0, %s28
    %s31 = sadd.s32 1, %s22
    %s32 = scalar_select %p29, %s31, %s22
    %p33 = scmp.ge.s32.totalorder %s32, 2
    %s34 = scalar_select %p33, 0, %s32
    %p35 = scmp.lt.s32.totalorder %s23, 1
    %s36 = ssub.s32 0, %s23
    %s37 = ssub.s32 %s23, 1
    %s38 = scalar_select %p35, %s36, %s37
    %p39 = scmp.lt.s32.totalorder %s30, 1
    %s40 = ssub.s32 0, %s30
    %s41 = ssub.s32 %s30, 1
    %s42 = scalar_select %p39, %s40, %s41
    %s43 = ssub.s32 %s22, %s34
    %s44 = ssub.s32 %s38, %s42
    %s45 = sor.u32 %s43, %s44
    %p46 = scmp.eq.s32.totalorder %s45, 0
    %s48 = sadd.s32 %s47, 1
    %s49 = scalar_select %p46, %s47, %s48
    %p52 = pneg %p46
    %p53 = scmp.eq.s32.totalorder %s15, 3
    %p54 = por %p52, %p53
    %p55 = scmp.ne.s32.totalorder %s47, %s50
    %p56 = scmp.eq.s32.totalorder %s15, 0
    %p57 = por %p55, %p56
    %p58 = scmp.ne.s32.totalorder %s47, %s50
    %p59 = scmp.eq.s32.totalorder %s20, 3
    %p60 = por %p58, %p59
    %p61 = scmp.ne.s32.totalorder %s50, %s51
    %p62 = scmp.eq.s32.totalorder %s20, 0
    %p63 = por %p61, %p62
    %p64 = scmp.ne.s32.totalorder %s50, %s51
    %p65 = scmp.eq.s32.totalorder %s21, 3
    %p66 = por %p64, %p65
    %p68 = scmp.ne.s32.totalorder %s51, %s67
    %p69 = scmp.eq.s32.totalorder %s21, 0
    %p70 = por %p68, %p69
    %s72 = sadd.s32 %s71, 1
    %p75 = scmp.eq.s32.totalorder %s15, 3
    %p76 = scmp.ne.s32.totalorder %s71, %s73
    %p77 = scmp.eq.s32.totalorder %s15, 0
    %p78 = por %p76, %p77
    %p79 = scmp.ne.s32.totalorder %s71, %s73
    %p80 = scmp.eq.s32.totalorder %s20, 3
    %p81 = por %p79, %p80
    %p82 = scmp.ne.s32.totalorder %s73, %s74
    %p83 = scmp.eq.s32.totalorder %s20, 0
    %p84 = por %p82, %p83
    %p85 = scmp.ne.s32.totalorder %s73, %s74
    %p86 = scmp.eq.s32.totalorder %s21, 3
    %p87 = por %p85, %p86
    %p89 = scmp.ne.s32.totalorder %s74, %s88
    %p90 = scmp.eq.s32.totalorder %s21, 0
    %p91 = por %p89, %p90
    %s93 = sadd.s32 %s92, 1
    %p96 = scmp.eq.s32.totalorder %s15, 3
    %p97 = scmp.ne.s32.totalorder %s92, %s94
    %p98 = scmp.eq.s32.totalorder %s15, 0
    %p99 = por %p97, %p98
    %p100 = scmp.ne.s32.totalorder %s92, %s94
    %p101 = scmp.eq.s32.totalorder %s20, 3
    %p102 = por %p100, %p101
    %p103 = scmp.ne.s32.totalorder %s94, %s95
    %p104 = scmp.eq.s32.totalorder %s20, 0
    %p105 = por %p103, %p104
    %p106 = scmp.ne.s32.totalorder %s94, %s95
    %p107 = scmp.eq.s32.totalorder %s21, 3
    %p108 = por %p106, %p107
    %p110 = scmp.ne.s32.totalorder %s95, %s109
    %p111 = scmp.eq.s32.totalorder %s21, 0
    %p112 = por %p110, %p111
    %s114 = sadd.s32 %s113, 1
    %p117 = scmp.eq.s32.totalorder %s15, 3
    %p118 = scmp.ne.s32.totalorder %s113, %s115
    %p119 = scmp.eq.s32.totalorder %s15, 0
    %p120 = por %p118, %p119
    %p121 = scmp.ne.s32.totalorder %s113, %s115
    %p122 = scmp.eq.s32.totalorder %s20, 3
    %p123 = por %p121, %p122
    %p124 = scmp.ne.s32.totalorder %s115, %s116
    %p125 = scmp.eq.s32.totalorder %s20, 0
    %p126 = por %p124, %p125
    %p127 = scmp.ne.s32.totalorder %s115, %s116
    %p128 = scmp.eq.s32.totalorder %s21, 3
    %p129 = por %p127, %p128
    %p131 = scmp.ne.s32.totalorder %s116, %s130
    %p132 = scmp.eq.s32.totalorder %s21, 0
    %p133 = por %p131, %p132
    %s135 = sadd.s32 %s134, 1
    %p138 = scmp.eq.s32.totalorder %s15, 3
    %p139 = scmp.ne.s32.totalorder %s134, %s136
    %p140 = scmp.eq.s32.totalorder %s15, 0
    %p141 = por %p139, %p140
    %p142 = scmp.ne.s32.totalorder %s134, %s136
    %p143 = scmp.eq.s32.totalorder %s20, 3
    %p144 = por %p142, %p143
    %p145 = scmp.ne.s32.totalorder %s136, %s137
    %p146 = scmp.eq.s32.totalorder %s20, 0
    %p147 = por %p145, %p146
    %p148 = scmp.ne.s32.totalorder %s136, %s137
    %p149 = scmp.eq.s32.totalorder %s21, 3
    %p150 = por %p148, %p149
    %p152 = scmp.ne.s32.totalorder %s137, %s151
    %p153 = scmp.eq.s32.totalorder %s21, 0
    %p154 = por %p152, %p153
    %s156 = sadd.s32 %s155, 1
    %p159 = scmp.eq.s32.totalorder %s15, 3
    %p160 = scmp.ne.s32.totalorder %s155, %s157
    %p161 = scmp.eq.s32.totalorder %s15, 0
    %p162 = por %p160, %p161
    %p163 = scmp.ne.s32.totalorder %s155, %s157
    %p164 = scmp.eq.s32.totalorder %s20, 3
    %p165 = por %p163, %p164
    %p166 = scmp.ne.s32.totalorder %s157, %s158
    %p167 = scmp.eq.s32.totalorder %s20, 0
    %p168 = por %p166, %p167
    %p169 = scmp.ne.s32.totalorder %s157, %s158
    %p170 = scmp.eq.s32.totalorder %s21, 3
    %p171 = por %p169, %p170
    %p173 = scmp.ne.s32.totalorder %s158, %s172
    %p174 = scmp.eq.s32.totalorder %s21, 0
    %p175 = por %p173, %p174
    %s177 = sadd.s32 %s176, 1
    %p180 = scmp.eq.s32.totalorder %s15, 3
    %p181 = scmp.ne.s32.totalorder %s176, %s178
    %p182 = scmp.eq.s32.totalorder %s15, 0
    %p183 = por %p181, %p182
    %p184 = scmp.ne.s32.totalorder %s176, %s178
    %p185 = scmp.eq.s32.totalorder %s20, 3
    %p186 = por %p184, %p185
    %p187 = scmp.ne.s32.totalorder %s178, %s179
    %p188 = scmp.eq.s32.totalorder %s20, 0
    %p189 = por %p187, %p188
    %p190 = scmp.ne.s32.totalorder %s178, %s179
    %p191 = scmp.eq.s32.totalorder %s21, 3
    %p192 = por %p190, %p191
    %p194 = scmp.ne.s32.totalorder %s179, %s193
    %p195 = scmp.eq.s32.totalorder %s21, 0
    %p196 = por %p194, %p195
    %s198 = sadd.s32 %s197, 1
    %p201 = scmp.eq.s32.totalorder %s15, 3
    %p202 = scmp.ne.s32.totalorder %s197, %s199
    %p203 = scmp.eq.s32.totalorder %s15, 0
    %p204 = por %p202, %p203
    %p205 = scmp.ne.s32.totalorder %s197, %s199
    %p206 = scmp.eq.s32.totalorder %s20, 3
    %p207 = por %p205, %p206
    %p208 = scmp.ne.s32.totalorder %s199, %s200
    %p209 = scmp.eq.s32.totalorder %s20, 0
    %p210 = por %p208, %p209
    %p211 = scmp.ne.s32.totalorder %s199, %s200
    %p212 = scmp.eq.s32.totalorder %s21, 3
    %p213 = por %p211, %p212
    %p215 = scmp.ne.s32.totalorder %s200, %s214
    %p216 = scmp.eq.s32.totalorder %s21, 0
    %p217 = por %p215, %p216
    %s219 = sadd.s32 %s218, 1
    %p222 = scmp.eq.s32.totalorder %s15, 3
    %p223 = scmp.ne.s32.totalorder %s218, %s220
    %p224 = scmp.eq.s32.totalorder %s15, 0
    %p225 = por %p223, %p224
    %p226 = scmp.ne.s32.totalorder %s218, %s220
    %p227 = scmp.eq.s32.totalorder %s20, 3
    %p228 = por %p226, %p227
    %p229 = scmp.ne.s32.totalorder %s220, %s221
    %p230 = scmp.eq.s32.totalorder %s20, 0
    %p231 = por %p229, %p230
    %p232 = scmp.ne.s32.totalorder %s220, %s221
    %p233 = scmp.eq.s32.totalorder %s21, 3
    %p234 = por %p232, %p233
    %p236 = scmp.ne.s32.totalorder %s221, %s235
    %p237 = scmp.eq.s32.totalorder %s21, 0
    %p238 = por %p236, %p237
    %s239 = ssub.s32 %s23, 1
    %p240 = scmp.gt.s32.totalorder %s239, 0
    %s241 = scalar_select %p240, %s239, 0
    %s242 = ssub.s32 %s30, 1
    %p243 = scmp.gt.s32.totalorder %s242, 0
    %s244 = scalar_select %p243, %s242, 0
    %s245 = ssub.s32 %s22, %s34
    %s246 = ssub.s32 %s241, %s244
    %s247 = sor.u32 %s245, %s246
    %p248 = scmp.eq.s32.totalorder %s247, 0
    %s250 = sadd.s32 %s249, 1
    %s251 = scalar_select %p248, %s249, %s250
    %p254 = pneg %p248
    %p255 = scmp.eq.s32.totalorder %s15, 3
    %p256 = por %p254, %p255
    %p257 = scmp.ne.s32.totalorder %s249, %s252
    %p258 = scmp.eq.s32.totalorder %s15, 0
    %p259 = por %p257, %p258
    %p260 = scmp.ne.s32.totalorder %s249, %s252
    %p261 = scmp.eq.s32.totalorder %s20, 3
    %p262 = por %p260, %p261
    %p263 = scmp.ne.s32.totalorder %s252, %s253
    %p264 = scmp.eq.s32.totalorder %s20, 0
    %p265 = por %p263, %p264
    %p266 = scmp.ne.s32.totalorder %s252, %s253
    %p267 = scmp.eq.s32.totalorder %s21, 3
    %p268 = por %p266, %p267
    %p270 = scmp.ne.s32.totalorder %s253, %s269
    %p271 = scmp.eq.s32.totalorder %s21, 0
    %p272 = por %p270, %p271
    %p273 = scmp.le.s32.totalorder 1, %s15
    %p274 = scmp.lt.s32.totalorder %s15, 5
    %p275 = pnand %p273, %p274
    %p276 = pneg %p275
    // Predicated region
    $region9: #{mixed_module_forward.4} parent=5 // pred_check
      _
    $region10: #{mixed_module_forward.4} parent=5 // pred_check_branch
      %278 = sbr.rel (%p275) target = $region12
    $region11: #{mixed_module_forward.4} parent=5 // pred_region
      %s279 = ssub.s32 %s15, 1
      // Predicated region
      $region13: #{mixed_module_forward.4} parent=11 // pred_check
        %p280 = pneg %p84
      $region14: #{mixed_module_forward.4} parent=11 // pred_check_branch
        %282 = sbr.rel (%p280) target = $region16
      $region15: #{mixed_module_forward.4} parent=11 // pred_region
        _
      $region16: #{mixed_module_forward.4} parent=11 // pred_fallthru
        _
      // Predicated region
      $region17: #{mixed_module_forward.4} parent=11 // pred_check
        %p283 = pneg %p105
      $region18: #{mixed_module_forward.4} parent=11 // pred_check_branch
        %285 = sbr.rel (%p283) target = $region20
      $region19: #{mixed_module_forward.4} parent=11 // pred_region
        _
      $region20: #{mixed_module_forward.4} parent=11 // pred_fallthru
        _
      // Predicated region
      $region21: #{mixed_module_forward.4} parent=11 // pred_check
        %p286 = pneg %p126
      $region22: #{mixed_module_forward.4} parent=11 // pred_check_branch
        %288 = sbr.rel (%p286) target = $region24
      $region23: #{mixed_module_forward.4} parent=11 // pred_region
        _
      $region24: #{mixed_module_forward.4} parent=11 // pred_fallthru
        _
      // Predicated region
      $region25: #{mixed_module_forward.4} parent=11 // pred_check
        %p289 = pneg %p147
      $region26: #{mixed_module_forward.4} parent=11 // pred_check_branch
        %291 = sbr.rel (%p289) target = $region28
      $region27: #{mixed_module_forward.4} parent=11 // pred_region
        _
      $region28: #{mixed_module_forward.4} parent=11 // pred_fallthru
        _
      // Predicated region
      $region29: #{mixed_module_forward.4} parent=11 // pred_check
        %p292 = pneg %p168
      $region30: #{mixed_module_forward.4} parent=11 // pred_check_branch
        %294 = sbr.rel (%p292) target = $region32
      $region31: #{mixed_module_forward.4} parent=11 // pred_region
        _
      $region32: #{mixed_module_forward.4} parent=11 // pred_fallthru
        _
      // Predicated region
      $region33: #{mixed_module_forward.4} parent=11 // pred_check
        %p295 = pneg %p189
      $region34: #{mixed_module_forward.4} parent=11 // pred_check_branch
        %297 = sbr.rel (%p295) target = $region36
      $region35: #{mixed_module_forward.4} parent=11 // pred_region
        _
      $region36: #{mixed_module_forward.4} parent=11 // pred_fallthru
        _
      // Predicated region
      $region37: #{mixed_module_forward.4} parent=11 // pred_check
        %p298 = pneg %p210
      $region38: #{mixed_module_forward.4} parent=11 // pred_check_branch
        %300 = sbr.rel (%p298) target = $region40
      $region39: #{mixed_module_forward.4} parent=11 // pred_region
        _
      $region40: #{mixed_module_forward.4} parent=11 // pred_fallthru
        _
      // Predicated region
      $region41: #{mixed_module_forward.4} parent=11 // pred_check
        %p301 = pneg %p231
      $region42: #{mixed_module_forward.4} parent=11 // pred_check_branch
        %303 = sbr.rel (%p301) target = $region44
      $region43: #{mixed_module_forward.4} parent=11 // pred_region
        _
      $region44: #{mixed_module_forward.4} parent=11 // pred_fallthru
        _
    $region12: #{mixed_module_forward.4} parent=5 // pred_fallthru
      _
    %p304 = scmp.lt.s32.totalorder %s15, 4
    // Predicated region
    $region45: #{mixed_module_forward.4} parent=5 // pred_check
      %p305 = pneg %p304
    $region46: #{mixed_module_forward.4} parent=5 // pred_check_branch
      %307 = sbr.rel (%p305) target = $region48
    $region47: #{mixed_module_forward.4} parent=5 // pred_region
      // Predicated region
      $region49: #{mixed_module_forward.4} parent=47 // pred_check
        %p308 = pneg %p57
      $region50: #{mixed_module_forward.4} parent=47 // pred_check_branch
        %310 = sbr.rel (%p308) target = $region52
      $region51: #{mixed_module_forward.4} parent=47 // pred_region
        %p311 = scmp.lt.s32.totalorder %s23, 1
        %s312 = ssub.s32 0, %s23
        %s313 = ssub.s32 %s23, 1
        %s314 = scalar_select %p311, %s312, %s313
        %p315 = scmp.lt.s32.totalorder %s22, 1
        %s316 = scalar_select %p315, %s22, 1
        %p317 = scmp.lt.s32.totalorder %s314, 0
        %s318 = scalar_select %p317, %s314, 0
        %s319 = sadd.s32 %s318, %s316
        %s320 = smul.addr %s319, 2
        %s321 = scalar_lea.vmem %s0, %s320
        %p322 = scmp.lt.s32.totalorder %s23, 1
        %s323 = ssub.s32 0, %s23
        %s324 = ssub.s32 %s23, 1
        %s325 = scalar_select %p322, %s323, %s324
      $region52: #{mixed_module_forward.4} parent=47 // pred_fallthru
        _
    $region48: #{mixed_module_forward.4} parent=5 // pred_fallthru
      _
    %p326 = scmp.le.s32.totalorder 1, %s15
    %p327 = scmp.lt.s32.totalorder %s15, 5
    %p328 = pnand %p326, %p327
    %p329 = pneg %p328
    // Predicated region
    $region53: #{mixed_module_forward.4} parent=5 // pred_check
      _
    $region54: #{mixed_module_forward.4} parent=5 // pred_check_branch
      %331 = sbr.rel (%p328) target = $region56
    $region55: #{mixed_module_forward.4} parent=5 // pred_region
      %s332 = ssub.s32 %s15, 1
      %p333 = scmp.lt.s32.totalorder %s25, 1
      %s334 = ssub.s32 0, %s25
      %s335 = ssub.s32 %s25, 1
      %s336 = scalar_select %p333, %s334, %s335
      %p337 = scmp.lt.s32.totalorder %s24, 1
      %s338 = scalar_select %p337, %s24, 1
      %p339 = scmp.lt.s32.totalorder %s336, 0
      %s340 = scalar_select %p339, %s336, 0
      %s341 = sadd.s32 %s340, %s338
      %s342 = smul.addr %s341, 2
      %s343 = scalar_lea.vmem %s0, %s342
      %p344 = pneg %p63
      %p345 = pneg %p60
      %p346 = pneg %p84
      %p347 = pneg %p81
      %p348 = pneg %p105
      %p349 = pneg %p102
      %p350 = pneg %p126
      %p351 = pneg %p123
      %p352 = pneg %p147
      %p353 = pneg %p144
      %p354 = pneg %p168
      %p355 = pneg %p165
      %p356 = pneg %p189
      %p357 = pneg %p186
      %p358 = pneg %p210
      %p359 = pneg %p207
      %p360 = pneg %p231
      %p361 = pneg %p228
      %p362 = pneg %p265
      %p363 = pneg %p262
      %s364 = ssub.s32 %s25, 1
      %p365 = scmp.gt.s32.totalorder %s364, 0
      %s366 = scalar_select %p365, %s364, 0
      %p367 = scmp.lt.s32.totalorder %s24, 1
      %s368 = scalar_select %p367, %s24, 1
      %p369 = scmp.lt.s32.totalorder %s366, 0
      %s370 = scalar_select %p369, %s366, 0
      %s371 = sadd.s32 %s370, %s368
      %s372 = smul.addr %s371, 2
      %s373 = scalar_lea.vmem %s9, %s372
      %p374 = scmp.lt.s32.totalorder %s25, 1
      %s375 = ssub.s32 0, %s25
      %s376 = ssub.s32 %s25, 1
      %s377 = scalar_select %p374, %s375, %s376
      %p378 = scmp.lt.s32.totalorder %s24, 1
      %s379 = scalar_select %p378, %s24, 1
      %p380 = scmp.lt.s32.totalorder %s377, 0
      %s381 = scalar_select %p380, %s377, 0
      %s382 = sadd.s32 %s381, %s379
      %s383 = smul.addr %s382, 2
      %s384 = scalar_lea.vmem %s0, %s383
      %p385 = scmp.lt.s32.totalorder %s25, 1
      %s386 = ssub.s32 0, %s25
      %s387 = ssub.s32 %s25, 1
      %s388 = scalar_select %p385, %s386, %s387
      %s389 = ssub.s32 %s25, 1
      %p390 = scmp.gt.s32.totalorder %s389, 0
      %s391 = scalar_select %p390, %s389, 0
      %p392 = scmp.lt.s32.totalorder %s24, 1
      %s393 = scalar_select %p392, %s24, 1
      %p394 = scmp.lt.s32.totalorder %s391, 0
      %s395 = scalar_select %p394, %s391, 0
      %s396 = sadd.s32 %s395, %s393
      %s397 = smul.addr %s396, 2
      %s398 = scalar_lea.vmem %s9, %s397
      %s399 = ssub.s32 %s25, 1
      %p400 = scmp.gt.s32.totalorder %s399, 0
      %s401 = scalar_select %p400, %s399, 0
      %p403 = scmp.eq.s32.totalorder %s25, 0
      // Predicated region
      $region57: #{mixed_module_forward.4} parent=55 // pred_check
        %p404 = pneg %p403
      $region58: #{mixed_module_forward.4} parent=55 // pred_check_branch
        %406 = sbr.rel (%p404) target = $region60
      $region59: #{mixed_module_forward.4} parent=55 // pred_region
        %vm407 = vcmask 253952
        %408 = vst.msk [vmem:[#allocation2] sm:$0x1] %vm407, 0.0
      $region60: #{mixed_module_forward.4} parent=55 // pred_fallthru
        _
      %v409 = vld [vmem:[%s384] sm:$0x3]
      %v410 = vld [vmem:[%s1] sm:$0x3]
      %v411 = vld [vmem:[%s2] sm:$0x3]
      %v412 = vpack.c.bf16 %v409, %v409
      %v413 = vld [vmem:[%s3] sm:$0xf]
      %v414 = vld [vmem:[%s3 + $0x4] sm:$0xf]
      %v415 = vld [vmem:[%s3 + $0x8] sm:$0xf]
      %v416 = vld [vmem:[%s3 + $0xc] sm:$0xf]
      %v417 = vld [vmem:[%s4] sm:$0x1]
      %v419 = vlaneseq
      %v420 = vshrl.u32 %v419, 7
      %v421 = vsub.s32 0, %v420
      %v422 = vrot.slane %v417, %v421
      %v428 = vunpack.c.l.b16 %v413
      %v429 = vunpack.c.l.b16 %v414
      %v430 = vunpack.c.l.b16 %v415
      %v431 = vunpack.c.l.b16 %v416
      %v432 = vpack.c.b16 %v429, %v428
      %v433 = vpack.c.b16 %v431, %v430
      %vm436 = vcmask 261120
      %v438 = vsel %vm436, %v412, 0
      %440 = vmatprep.subr.bf16.mxu0 0
      %441 = vmatpush1.bf16.msra.mxu0 %v432
      %442 = vmatprep.subr.bf16.mxu0 0
      %443 = vmatpush1.bf16.msra.mxu0 %v433
      %444 = vmatprep.subr.bf16.mxu0 0
      %445 = vmatpush1.bf16.msra.mxu0 0
      %446 = vmatprep.subr.bf16.mxu0 0
      %447 = vmatpush1.bf16.msra.mxu0 0
      %448 = vmatprep.subr.bf16.mxu0 0
      %449 = vmatpush1.bf16.msra.mxu0 0
      %450 = vmatprep.subr.bf16.mxu0 0
      %451 = vmatpush1.bf16.msra.mxu0 0
      %452 = vmatprep.subr.bf16.mxu0 0
      %453 = vmatpush1.bf16.msra.mxu0 0
      %454 = vmatprep.subr.bf16.mxu0 0
      %455 = vmatpush1.bf16.msra.mxu0 0
      %456 = vmatprep.subr.bf16.mxu0 0
      %457 = vmatpush1.bf16.msra.mxu0 0
      %458 = vmatprep.subr.bf16.mxu0 0
      %459 = vmatpush1.bf16.msra.mxu0 0
      %460 = vmatprep.subr.bf16.mxu0 0
      %461 = vmatpush1.bf16.msra.mxu0 0
      %462 = vmatprep.subr.bf16.mxu0 0
      %463 = vmatpush1.bf16.msra.mxu0 0
      %464 = vmatprep.subr.bf16.mxu0 0
      %465 = vmatpush1.bf16.msra.mxu0 0
      %466 = vmatprep.subr.bf16.mxu0 0
      %467 = vmatpush1.bf16.msra.mxu0 0
      %468 = vmatprep.subr.bf16.mxu0 0
      %469 = vmatpush1.bf16.msra.mxu0 0
      %470 = vmatprep.subr.bf16.mxu0 0
      %471 = vmatpush1.bf16.msra.mxu0 0
      %472 = vmatprep.mubr.bf16.mxu0 0
      %473 = vmatmul.mubr.bf16.gmra.mrb[0].mxu0 %v438
      %v474 = vpop.f32.mrb[0].mxu0
      %v475 = vadd.f32 %v422, %v474
      %v476 = vpop.f32.mrb[0].mxu0
      %v477 = vpop.f32.mrb[0].mxu0
      %v478 = vpop.f32.mrb[0].mxu0
      %479 = vdwg.mxu0
      %p480 = scmp.lt.s32.totalorder %s25, 1
      // Predicated region
      $region61: #{mixed_module_forward.4} parent=55 // pred_check
        %p481 = pneg %p480
      $region62: #{mixed_module_forward.4} parent=55 // pred_check_branch
        %483 = sbr.rel (%p481) target = $region64
      $region63: #{mixed_module_forward.4} parent=55 // pred_region
        %v484 = vld [vmem:[#allocation2] sm:$0x1]
        %v486 = vlaneseq
        %v487 = vshrl.u32 %v486, 7
        %v488 = vsub.s32 0, %v487
        %v489 = vrot.slane %v484, %v488
        %v491 = vmul.f32 %v411, %v489
        %v492 = vmul.f32 %v410, %v475
        %vm493 = vcmask 254976
        %v494 = vsel %vm493, %v492, 0.0
        %v495 = vrot.slane %v494, 4
        %v496 = vadd.f32 %v494, %v495
        %v497 = vrot.slane %v496, 2
        %v498 = vadd.f32 %v496, %v497
        %v499 = vrot.slane %v498, 1
        %v500 = vadd.f32 %v498, %v499
        %v501 = vadd.f32 %v491, %v500
        %vm502 = vcmask 254977
        %503 = vst.msk [vmem:[#allocation2 - $0x1] sm:$0x2] %vm502, %v501
      $region64: #{mixed_module_forward.4} parent=55 // pred_fallthru
        _
      %p504 = scmp.ge.s32.totalorder %s25, 1
      // Predicated region
      $region65: #{mixed_module_forward.4} parent=55 // pred_check
        %p505 = pneg %p504
      $region66: #{mixed_module_forward.4} parent=55 // pred_check_branch
        %507 = sbr.rel (%p505) target = $region68
      $region67: #{mixed_module_forward.4} parent=55 // pred_region
        %v508 = vld [vmem:[%s5] sm:$0xf]
        %v509 = vld [vmem:[%s5 + $0x4] sm:$0xf]
        %v510 = vld [vmem:[%s5 + $0x8] sm:$0xf]
        %v511 = vld [vmem:[%s5 + $0xc] sm:$0xf]
        %v512 = vld [vmem:[%s6] sm:$0x1]
        %v514 = vlaneseq
        %v515 = vshrl.u32 %v514, 7
        %v516 = vsub.s32 0, %v515
        %v517 = vrot.slane %v512, %v516
        %v523 = vunpack.c.l.b16 %v508
        %v524 = vunpack.c.l.b16 %v509
        %v525 = vunpack.c.l.b16 %v510
        %v526 = vunpack.c.l.b16 %v511
        %v527 = vpack.c.b16 %v524, %v523
        %v528 = vpack.c.b16 %v526, %v525
        %531 = vmatprep.subr.bf16.mxu0 0
        %532 = vmatpush1.bf16.msra.mxu0 %v527
        %533 = vmatprep.subr.bf16.mxu0 0
        %534 = vmatpush1.bf16.msra.mxu0 %v528
        %535 = vmatprep.subr.bf16.mxu0 0
        %536 = vmatpush1.bf16.msra.mxu0 0
        %537 = vmatprep.subr.bf16.mxu0 0
        %538 = vmatpush1.bf16.msra.mxu0 0
        %539 = vmatprep.subr.bf16.mxu0 0
        %540 = vmatpush1.bf16.msra.mxu0 0
        %541 = vmatprep.subr.bf16.mxu0 0
        %542 = vmatpush1.bf16.msra.mxu0 0
        %543 = vmatprep.subr.bf16.mxu0 0
        %544 = vmatpush1.bf16.msra.mxu0 0
        %545 = vmatprep.subr.bf16.mxu0 0
        %546 = vmatpush1.bf16.msra.mxu0 0
        %547 = vmatprep.subr.bf16.mxu0 0
        %548 = vmatpush1.bf16.msra.mxu0 0
        %549 = vmatprep.subr.bf16.mxu0 0
        %550 = vmatpush1.bf16.msra.mxu0 0
        %551 = vmatprep.subr.bf16.mxu0 0
        %552 = vmatpush1.bf16.msra.mxu0 0
        %553 = vmatprep.subr.bf16.mxu0 0
        %554 = vmatpush1.bf16.msra.mxu0 0
        %555 = vmatprep.subr.bf16.mxu0 0
        %556 = vmatpush1.bf16.msra.mxu0 0
        %557 = vmatprep.subr.bf16.mxu0 0
        %558 = vmatpush1.bf16.msra.mxu0 0
        %559 = vmatprep.subr.bf16.mxu0 0
        %560 = vmatpush1.bf16.msra.mxu0 0
        %561 = vmatprep.subr.bf16.mxu0 0
        %562 = vmatpush1.bf16.msra.mxu0 0
        %563 = vmatprep.mubr.bf16.mxu0 0
        %564 = vmatmul.mubr.bf16.gmra.mrb[0].mxu0 %v438
        %v565 = vpop.f32.mrb[0].mxu0
        %v566 = vadd.f32 %v517, %v565
        %v567 = vpop.f32.mrb[0].mxu0
        %v568 = vpop.f32.mrb[0].mxu0
        %v569 = vpop.f32.mrb[0].mxu0
        %570 = vdwg.mxu0
        %v571 = vsub.f32 0.0, %v566
        %v572 = vmul.f32 %v571, 1.442695
        %v573 = vpow.pop %v572
        %v574 = vadd.f32 %v573, 1.0
        %v575 = vrcp.pop %v574
        %v576 = vmul.f32 1.0, %v575
        %v577 = vmul.f32 %v566, %v576
        %v579 = vrot.slane %v475, 7
        %vm581 = vcmask 1040384
        %v582 = vsel %vm581, 0.0, %v579
        %v583 = vlaneseq
        %v584 = vshrl.u32 %v583, 7
        %v585 = vsub.s32 1, %v584
        %v586 = vrot.slane %v410, %v585
        %v587 = vmul.f32 %v586, %v582
        %v588 = vadd.f32 %v475, %v587
        %v589 = vld [vmem:[#allocation2] sm:$0x1]
        %v591 = vlaneseq
        %v592 = vshrl.u32 %v591, 7
        %v593 = vsub.s32 0, %v592
        %v594 = vrot.slane %v589, %v593
        %v596 = vmul.f32 %v411, %v594
        %v597 = vadd.f32 %v588, %v596
        %v598 = vmul.f32 %v597, %v577
        %v599 = vpack.c.bf16 %v598, %v598
        %v600 = vld [vmem:[%s7] sm:$0xf]
        %v601 = vld [vmem:[%s7 + $0x4] sm:$0xf]
        %v602 = vld [vmem:[%s7 + $0x8] sm:$0xf]
        %v603 = vld [vmem:[%s7 + $0xc] sm:$0xf]
        %v608 = vunpack.c.l.b16 %v600
        %v609 = vunpack.c.l.b16 %v601
        %v610 = vunpack.c.l.b16 %v602
        %v611 = vunpack.c.l.b16 %v603
        %v612 = vpack.c.b16 %v609, %v608
        %v613 = vpack.c.b16 %v611, %v610
        %v617 = vsel %vm436, %v599, 0
        %619 = vmatprep.subr.bf16.mxu0 0
        %620 = vmatpush1.bf16.msra.mxu0 %v612
        %621 = vmatprep.subr.bf16.mxu0 0
        %622 = vmatpush1.bf16.msra.mxu0 %v613
        %623 = vmatprep.subr.bf16.mxu0 0
        %624 = vmatpush1.bf16.msra.mxu0 0
        %625 = vmatprep.subr.bf16.mxu0 0
        %626 = vmatpush1.bf16.msra.mxu0 0
        %627 = vmatprep.subr.bf16.mxu0 0
        %628 = vmatpush1.bf16.msra.mxu0 0
        %629 = vmatprep.subr.bf16.mxu0 0
        %630 = vmatpush1.bf16.msra.mxu0 0
        %631 = vmatprep.subr.bf16.mxu0 0
        %632 = vmatpush1.bf16.msra.mxu0 0
        %633 = vmatprep.subr.bf16.mxu0 0
        %634 = vmatpush1.bf16.msra.mxu0 0
        %635 = vmatprep.subr.bf16.mxu0 0
        %636 = vmatpush1.bf16.msra.mxu0 0
        %637 = vmatprep.subr.bf16.mxu0 0
        %638 = vmatpush1.bf16.msra.mxu0 0
        %639 = vmatprep.subr.bf16.mxu0 0
        %640 = vmatpush1.bf16.msra.mxu0 0
        %641 = vmatprep.subr.bf16.mxu0 0
        %642 = vmatpush1.bf16.msra.mxu0 0
        %643 = vmatprep.subr.bf16.mxu0 0
        %644 = vmatpush1.bf16.msra.mxu0 0
        %645 = vmatprep.subr.bf16.mxu0 0
        %646 = vmatpush1.bf16.msra.mxu0 0
        %647 = vmatprep.subr.bf16.mxu0 0
        %648 = vmatpush1.bf16.msra.mxu0 0
        %649 = vmatprep.subr.bf16.mxu0 0
        %650 = vmatpush1.bf16.msra.mxu0 0
        %651 = vmatprep.mubr.bf16.mxu0 0
        %652 = vmatmul.mubr.bf16.gmra.mrb[0].mxu0 %v617
        %v653 = vpop.f32.mrb[0].mxu0
        %v654 = vadd.f32 0.0, %v653
        %v655 = vpop.f32.mrb[0].mxu0
        %v656 = vpop.f32.mrb[0].mxu0
        %v657 = vpop.f32.mrb[0].mxu0
        %658 = vdwg.mxu0
        %v659 = vadd.f32 %v409, %v654
        %v660 = vld [vmem:[%s8] sm:$0x1]
        %v662 = vlaneseq
        %v663 = vshrl.u32 %v662, 7
        %v664 = vsub.s32 0, %v663
        %v665 = vrot.slane %v660, %v664
        %v667 = vadd.f32 %v659, %v665
        %vm668 = vcmask 254976
        %669 = vst.msk [vmem:[%s398] sm:$0x3] %vm668, %v667
        %vm670 = vcmask 254977
        %671 = vst.msk [vmem:[#allocation2 - $0x1] sm:$0x2] %vm670, %v597
      $region68: #{mixed_module_forward.4} parent=55 // pred_fallthru
        _
      %s672 = ssub.s32 %s25, 1
      %p673 = scmp.gt.s32.totalorder %s672, 0
      %s674 = scalar_select %p673, %s672, 0
      %p675 = scmp.lt.s32.totalorder %s24, 1
      %s676 = scalar_select %p675, %s24, 1
      %p677 = scmp.lt.s32.totalorder %s674, 0
      %s678 = scalar_select %p677, %s674, 0
      %s679 = sadd.s32 %s678, %s676
      %s680 = smul.addr %s679, 2
      %s681 = scalar_lea.vmem %s9, %s680
      // Predicated region
      $region69: #{mixed_module_forward.4} parent=55 // pred_check
        %p682 = pneg %p262
      $region70: #{mixed_module_forward.4} parent=55 // pred_check_branch
        %684 = sbr.rel (%p682) target = $region72
      $region71: #{mixed_module_forward.4} parent=55 // pred_region
        %s685 = ssub.s32 %s25, 1
        %p686 = scmp.gt.s32.totalorder %s685, 0
        %s687 = scalar_select %p686, %s685, 0
      $region72: #{mixed_module_forward.4} parent=55 // pred_fallthru
        _
    $region56: #{mixed_module_forward.4} parent=5 // pred_fallthru
      _
    %p688 = scmp.le.s32.totalorder 2, %s15
    // Predicated region
    $region73: #{mixed_module_forward.4} parent=5 // pred_check
      %p689 = pneg %p688
    $region74: #{mixed_module_forward.4} parent=5 // pred_check_branch
      %691 = sbr.rel (%p689) target = $region76
    $region75: #{mixed_module_forward.4} parent=5 // pred_region
      %s692 = ssub.s32 %s15, 2
      // Predicated region
      $region77: #{mixed_module_forward.4} parent=75 // pred_check
        %p693 = pneg %p268
      $region78: #{mixed_module_forward.4} parent=75 // pred_check_branch
        %695 = sbr.rel (%p693) target = $region80
      $region79: #{mixed_module_forward.4} parent=75 // pred_region
        %s696 = ssub.s32 %s27, 1
        %p697 = scmp.gt.s32.totalorder %s696, 0
        %s698 = scalar_select %p697, %s696, 0
        %p699 = scmp.lt.s32.totalorder %s26, 1
        %s700 = scalar_select %p699, %s26, 1
        %p701 = scmp.lt.s32.totalorder %s698, 0
        %s702 = scalar_select %p701, %s698, 0
        %s703 = sadd.s32 %s702, %s700
        %s704 = smul.addr %s703, 2
        %s705 = scalar_lea.vmem %s9, %s704
      $region80: #{mixed_module_forward.4} parent=75 // pred_fallthru
        _
    $region76: #{mixed_module_forward.4} parent=5 // pred_fallthru
      _
  $region6: #{mixed_module_forward.4} parent=0 // loop_footer
    %s19 = sadd.s32 1, %s15
  $region7: #{mixed_module_forward.4} parent=0 // loop_footer_branch
    %14 = sbr.rel target = $region3
  $region8: #{mixed_module_forward.4} parent=0 // loop_exit
    _

// kernel: mixed_module_forward.3
$region0: #{mixed_module_forward.3}
  #allocation0 [shape = 'u32[]', space=smem, size = 0x4, offset = 0x4, fixed_abs, tag = 'smem constant byte address 0x4 - core index']
  #allocation1 [shape = 'u32[144,128]{1,0:T(1,128)}', space=vmem, size = 0x12000, scoped, tag = 'internal scratch']
  %s0 = inlined_call_operand.vmem [shape: bf16[2,16,32], index: 0, kind: input, shape index: {}]
  %s1 = inlined_call_operand.vmem [shape: bf16[2,1,32], index: 1, kind: input, shape index: {}]
  %s2 = inlined_call_operand.vmem [shape: bf16[32,32], index: 2, kind: input, shape index: {}]
  %s3 = inlined_call_operand.vmem [shape: f32[1,32], index: 3, kind: input, shape index: {}]
  %s4 = inlined_call_operand.vmem [shape: f32[8,32], index: 4, kind: input, shape index: {}]
  %s5 = inlined_call_operand.vmem [shape: f32[1,32], index: 5, kind: input, shape index: {}]
  %s6 = inlined_call_operand.vmem [shape: bf16[32,64], index: 6, kind: input, shape index: {}]
  %s7 = inlined_call_operand.vmem [shape: bf16[32,32], index: 7, kind: input, shape index: {}]
  %s8 = inlined_call_operand.vmem [shape: f32[1,32], index: 8, kind: input, shape index: {}]
  %s9 = inlined_call_operand.vmem [shape: bf16[32,32], index: 9, kind: input, shape index: {}]
  %s10 = inlined_call_operand.vmem [shape: f32[1,32], index: 10, kind: input, shape index: {}]
  %s11 = inlined_call_operand.vmem [shape: f32[2,2,32], index: 11, kind: output, shape index: {}]
  %s12 = sld [smem:[#allocation0]]
  $region77: #{mixed_module_forward.3} parent=0
    _
  %s14 = ssub.s32 1, %s12
  %s15 = scalar_select 0, %s14, %s12
  loop: start=0, step=1, limit=4
  $region2: #{mixed_module_forward.3} parent=0 // loop_pre_header
    _
  $region3: #{mixed_module_forward.3} parent=0 // loop_header
    %s17 = sphi 0, %s21
    %p18 = scmp.ge.s32.totalorder %s17, 4
    %s24 = sphi 0, %s36
    %s25 = sphi 0, %s32
    %s26 = sphi 0, %s24
    %s27 = sphi 0, %s25
    %s28 = sphi 0, %s26
    %s29 = sphi 0, %s27
    %s41 = sphi 0, %s43
    %s44 = sphi 0, %s41
    %s45 = sphi 0, %s44
    %s61 = sphi 0, %s45
    %s67 = sphi 0, %s69
    %s70 = sphi 0, %s67
    %s71 = sphi 0, %s70
    %s87 = sphi 0, %s71
    %s91 = sphi 0, %s91
    %s93 = sphi 0, %s91
    %s94 = sphi 0, %s93
    %s108 = sphi 0, %s94
    %s112 = sphi 0, %s112
    %s114 = sphi 0, %s112
    %s115 = sphi 0, %s114
    %s129 = sphi 0, %s115
    %s133 = sphi 0, %s133
    %s135 = sphi 0, %s133
    %s136 = sphi 0, %s135
    %s150 = sphi 0, %s136
    %s154 = sphi 0, %s154
    %s156 = sphi 0, %s154
    %s157 = sphi 0, %s156
    %s171 = sphi 0, %s157
    %s175 = sphi 0, %s175
    %s177 = sphi 0, %s175
    %s178 = sphi 0, %s177
    %s192 = sphi 0, %s178
    %s196 = sphi 0, %s196
    %s198 = sphi 0, %s196
    %s199 = sphi 0, %s198
    %s213 = sphi 0, %s199
    %s217 = sphi 0, %s217
    %s219 = sphi 0, %s217
    %s220 = sphi 0, %s219
    %s234 = sphi 0, %s220
    %s238 = sphi 0, %s238
    %s240 = sphi 0, %s238
    %s241 = sphi 0, %s240
    %s255 = sphi 0, %s241
    %s259 = sphi 0, %s259
    %s261 = sphi 0, %s259
    %s262 = sphi 0, %s261
    %s276 = sphi 0, %s262
    %s284 = sphi 0, %s286
    %s287 = sphi 0, %s284
    %s288 = sphi 0, %s287
    %s304 = sphi 0, %s288
  $region4: #{mixed_module_forward.3} parent=0 // loop_header_branch
    %20 = sbr.rel (%p18) target = $region8
  $region5: #{mixed_module_forward.3} parent=0 // loop_body
    %s22 = ssub.s32 %s17, 1
    %s23 = ssub.s32 %s17, 2
    %s30 = sadd.s32 1, %s25
    %p31 = scmp.ge.s32.totalorder %s30, 1
    %s32 = scalar_select %p31, 0, %s30
    %s33 = sadd.s32 1, %s24
    %s34 = scalar_select %p31, %s33, %s24
    %p35 = scmp.ge.s32.totalorder %s34, 2
    %s36 = scalar_select %p35, 0, %s34
    %s37 = ssub.s32 %s24, %s36
    %s38 = ssub.s32 %s25, %s32
    %s39 = sor.u32 %s37, %s38
    %p40 = scmp.eq.s32.totalorder %s39, 0
    %s42 = sadd.s32 %s41, 1
    %s43 = scalar_select %p40, %s41, %s42
    %p46 = pneg %p40
    %p47 = scmp.eq.s32.totalorder %s17, 1
    %p48 = por %p46, %p47
    %p49 = scmp.ne.s32.totalorder %s41, %s44
    %p50 = scmp.eq.s32.totalorder %s17, 0
    %p51 = por %p49, %p50
    %p52 = scmp.ne.s32.totalorder %s41, %s44
    %p53 = scmp.eq.s32.totalorder %s22, 1
    %p54 = por %p52, %p53
    %p55 = scmp.ne.s32.totalorder %s44, %s45
    %p56 = scmp.eq.s32.totalorder %s22, 0
    %p57 = por %p55, %p56
    %p58 = scmp.ne.s32.totalorder %s44, %s45
    %p59 = scmp.eq.s32.totalorder %s23, 1
    %p60 = por %p58, %p59
    %p62 = scmp.ne.s32.totalorder %s45, %s61
    %p63 = scmp.eq.s32.totalorder %s23, 0
    %p64 = por %p62, %p63
    %s65 = ssub.s32 %s24, %s36
    %p66 = scmp.eq.s32.totalorder %s65, 0
    %s68 = sadd.s32 %s67, 1
    %s69 = scalar_select %p66, %s67, %s68
    %p72 = pneg %p66
    %p73 = scmp.eq.s32.totalorder %s17, 1
    %p74 = por %p72, %p73
    %p75 = scmp.ne.s32.totalorder %s67, %s70
    %p76 = scmp.eq.s32.totalorder %s17, 0
    %p77 = por %p75, %p76
    %p78 = scmp.ne.s32.totalorder %s67, %s70
    %p79 = scmp.eq.s32.totalorder %s22, 1
    %p80 = por %p78, %p79
    %p81 = scmp.ne.s32.totalorder %s70, %s71
    %p82 = scmp.eq.s32.totalorder %s22, 0
    %p83 = por %p81, %p82
    %p84 = scmp.ne.s32.totalorder %s70, %s71
    %p85 = scmp.eq.s32.totalorder %s23, 1
    %p86 = por %p84, %p85
    %p88 = scmp.ne.s32.totalorder %s71, %s87
    %p89 = scmp.eq.s32.totalorder %s23, 0
    %p90 = por %p88, %p89
    %s92 = sadd.s32 %s91, 1
    %p95 = scmp.eq.s32.totalorder %s17, 1
    %p96 = scmp.ne.s32.totalorder %s91, %s93
    %p97 = scmp.eq.s32.totalorder %s17, 0
    %p98 = por %p96, %p97
    %p99 = scmp.ne.s32.totalorder %s91, %s93
    %p100 = scmp.eq.s32.totalorder %s22, 1
    %p101 = por %p99, %p100
    %p102 = scmp.ne.s32.totalorder %s93, %s94
    %p103 = scmp.eq.s32.totalorder %s22, 0
    %p104 = por %p102, %p103
    %p105 = scmp.ne.s32.totalorder %s93, %s94
    %p106 = scmp.eq.s32.totalorder %s23, 1
    %p107 = por %p105, %p106
    %p109 = scmp.ne.s32.totalorder %s94, %s108
    %p110 = scmp.eq.s32.totalorder %s23, 0
    %p111 = por %p109, %p110
    %s113 = sadd.s32 %s112, 1
    %p116 = scmp.eq.s32.totalorder %s17, 1
    %p117 = scmp.ne.s32.totalorder %s112, %s114
    %p118 = scmp.eq.s32.totalorder %s17, 0
    %p119 = por %p117, %p118
    %p120 = scmp.ne.s32.totalorder %s112, %s114
    %p121 = scmp.eq.s32.totalorder %s22, 1
    %p122 = por %p120, %p121
    %p123 = scmp.ne.s32.totalorder %s114, %s115
    %p124 = scmp.eq.s32.totalorder %s22, 0
    %p125 = por %p123, %p124
    %p126 = scmp.ne.s32.totalorder %s114, %s115
    %p127 = scmp.eq.s32.totalorder %s23, 1
    %p128 = por %p126, %p127
    %p130 = scmp.ne.s32.totalorder %s115, %s129
    %p131 = scmp.eq.s32.totalorder %s23, 0
    %p132 = por %p130, %p131
    %s134 = sadd.s32 %s133, 1
    %p137 = scmp.eq.s32.totalorder %s17, 1
    %p138 = scmp.ne.s32.totalorder %s133, %s135
    %p139 = scmp.eq.s32.totalorder %s17, 0
    %p140 = por %p138, %p139
    %p141 = scmp.ne.s32.totalorder %s133, %s135
    %p142 = scmp.eq.s32.totalorder %s22, 1
    %p143 = por %p141, %p142
    %p144 = scmp.ne.s32.totalorder %s135, %s136
    %p145 = scmp.eq.s32.totalorder %s22, 0
    %p146 = por %p144, %p145
    %p147 = scmp.ne.s32.totalorder %s135, %s136
    %p148 = scmp.eq.s32.totalorder %s23, 1
    %p149 = por %p147, %p148
    %p151 = scmp.ne.s32.totalorder %s136, %s150
    %p152 = scmp.eq.s32.totalorder %s23, 0
    %p153 = por %p151, %p152
    %s155 = sadd.s32 %s154, 1
    %p158 = scmp.eq.s32.totalorder %s17, 1
    %p159 = scmp.ne.s32.totalorder %s154, %s156
    %p160 = scmp.eq.s32.totalorder %s17, 0
    %p161 = por %p159, %p160
    %p162 = scmp.ne.s32.totalorder %s154, %s156
    %p163 = scmp.eq.s32.totalorder %s22, 1
    %p164 = por %p162, %p163
    %p165 = scmp.ne.s32.totalorder %s156, %s157
    %p166 = scmp.eq.s32.totalorder %s22, 0
    %p167 = por %p165, %p166
    %p168 = scmp.ne.s32.totalorder %s156, %s157
    %p169 = scmp.eq.s32.totalorder %s23, 1
    %p170 = por %p168, %p169
    %p172 = scmp.ne.s32.totalorder %s157, %s171
    %p173 = scmp.eq.s32.totalorder %s23, 0
    %p174 = por %p172, %p173
    %s176 = sadd.s32 %s175, 1
    %p179 = scmp.eq.s32.totalorder %s17, 1
    %p180 = scmp.ne.s32.totalorder %s175, %s177
    %p181 = scmp.eq.s32.totalorder %s17, 0
    %p182 = por %p180, %p181
    %p183 = scmp.ne.s32.totalorder %s175, %s177
    %p184 = scmp.eq.s32.totalorder %s22, 1
    %p185 = por %p183, %p184
    %p186 = scmp.ne.s32.totalorder %s177, %s178
    %p187 = scmp.eq.s32.totalorder %s22, 0
    %p188 = por %p186, %p187
    %p189 = scmp.ne.s32.totalorder %s177, %s178
    %p190 = scmp.eq.s32.totalorder %s23, 1
    %p191 = por %p189, %p190
    %p193 = scmp.ne.s32.totalorder %s178, %s192
    %p194 = scmp.eq.s32.totalorder %s23, 0
    %p195 = por %p193, %p194
    %s197 = sadd.s32 %s196, 1
    %p200 = scmp.eq.s32.totalorder %s17, 1
    %p201 = scmp.ne.s32.totalorder %s196, %s198
    %p202 = scmp.eq.s32.totalorder %s17, 0
    %p203 = por %p201, %p202
    %p204 = scmp.ne.s32.totalorder %s196, %s198
    %p205 = scmp.eq.s32.totalorder %s22, 1
    %p206 = por %p204, %p205
    %p207 = scmp.ne.s32.totalorder %s198, %s199
    %p208 = scmp.eq.s32.totalorder %s22, 0
    %p209 = por %p207, %p208
    %p210 = scmp.ne.s32.totalorder %s198, %s199
    %p211 = scmp.eq.s32.totalorder %s23, 1
    %p212 = por %p210, %p211
    %p214 = scmp.ne.s32.totalorder %s199, %s213
    %p215 = scmp.eq.s32.totalorder %s23, 0
    %p216 = por %p214, %p215
    %s218 = sadd.s32 %s217, 1
    %p221 = scmp.eq.s32.totalorder %s17, 1
    %p222 = scmp.ne.s32.totalorder %s217, %s219
    %p223 = scmp.eq.s32.totalorder %s17, 0
    %p224 = por %p222, %p223
    %p225 = scmp.ne.s32.totalorder %s217, %s219
    %p226 = scmp.eq.s32.totalorder %s22, 1
    %p227 = por %p225, %p226
    %p228 = scmp.ne.s32.totalorder %s219, %s220
    %p229 = scmp.eq.s32.totalorder %s22, 0
    %p230 = por %p228, %p229
    %p231 = scmp.ne.s32.totalorder %s219, %s220
    %p232 = scmp.eq.s32.totalorder %s23, 1
    %p233 = por %p231, %p232
    %p235 = scmp.ne.s32.totalorder %s220, %s234
    %p236 = scmp.eq.s32.totalorder %s23, 0
    %p237 = por %p235, %p236
    %s239 = sadd.s32 %s238, 1
    %p242 = scmp.eq.s32.totalorder %s17, 1
    %p243 = scmp.ne.s32.totalorder %s238, %s240
    %p244 = scmp.eq.s32.totalorder %s17, 0
    %p245 = por %p243, %p244
    %p246 = scmp.ne.s32.totalorder %s238, %s240
    %p247 = scmp.eq.s32.totalorder %s22, 1
    %p248 = por %p246, %p247
    %p249 = scmp.ne.s32.totalorder %s240, %s241
    %p250 = scmp.eq.s32.totalorder %s22, 0
    %p251 = por %p249, %p250
    %p252 = scmp.ne.s32.totalorder %s240, %s241
    %p253 = scmp.eq.s32.totalorder %s23, 1
    %p254 = por %p252, %p253
    %p256 = scmp.ne.s32.totalorder %s241, %s255
    %p257 = scmp.eq.s32.totalorder %s23, 0
    %p258 = por %p256, %p257
    %s260 = sadd.s32 %s259, 1
    %p263 = scmp.eq.s32.totalorder %s17, 1
    %p264 = scmp.ne.s32.totalorder %s259, %s261
    %p265 = scmp.eq.s32.totalorder %s17, 0
    %p266 = por %p264, %p265
    %p267 = scmp.ne.s32.totalorder %s259, %s261
    %p268 = scmp.eq.s32.totalorder %s22, 1
    %p269 = por %p267, %p268
    %p270 = scmp.ne.s32.totalorder %s261, %s262
    %p271 = scmp.eq.s32.totalorder %s22, 0
    %p272 = por %p270, %p271
    %p273 = scmp.ne.s32.totalorder %s261, %s262
    %p274 = scmp.eq.s32.totalorder %s23, 1
    %p275 = por %p273, %p274
    %p277 = scmp.ne.s32.totalorder %s262, %s276
    %p278 = scmp.eq.s32.totalorder %s23, 0
    %p279 = por %p277, %p278
    %s280 = ssub.s32 %s24, %s36
    %s281 = ssub.s32 %s25, %s32
    %s282 = sor.u32 %s280, %s281
    %p283 = scmp.eq.s32.totalorder %s282, 0
    %s285 = sadd.s32 %s284, 1
    %s286 = scalar_select %p283, %s284, %s285
    %p289 = pneg %p283
    %p290 = scmp.eq.s32.totalorder %s17, 1
    %p291 = por %p289, %p290
    %p292 = scmp.ne.s32.totalorder %s284, %s287
    %p293 = scmp.eq.s32.totalorder %s17, 0
    %p294 = por %p292, %p293
    %p295 = scmp.ne.s32.totalorder %s284, %s287
    %p296 = scmp.eq.s32.totalorder %s22, 1
    %p297 = por %p295, %p296
    %p298 = scmp.ne.s32.totalorder %s287, %s288
    %p299 = scmp.eq.s32.totalorder %s22, 0
    %p300 = por %p298, %p299
    %p301 = scmp.ne.s32.totalorder %s287, %s288
    %p302 = scmp.eq.s32.totalorder %s23, 1
    %p303 = por %p301, %p302
    %p305 = scmp.ne.s32.totalorder %s288, %s304
    %p306 = scmp.eq.s32.totalorder %s23, 0
    %p307 = por %p305, %p306
    %p308 = scmp.le.s32.totalorder 1, %s17
    %p309 = scmp.lt.s32.totalorder %s17, 3
    %p310 = pnand %p308, %p309
    %p311 = pneg %p310
    // Predicated region
    $region9: #{mixed_module_forward.3} parent=5 // pred_check
      _
    $region10: #{mixed_module_forward.3} parent=5 // pred_check_branch
      %313 = sbr.rel (%p310) target = $region12
    $region11: #{mixed_module_forward.3} parent=5 // pred_region
      %s314 = ssub.s32 %s17, 1
      // Predicated region
      $region13: #{mixed_module_forward.3} parent=11 // pred_check
        %p315 = pneg %p104
      $region14: #{mixed_module_forward.3} parent=11 // pred_check_branch
        %317 = sbr.rel (%p315) target = $region16
      $region15: #{mixed_module_forward.3} parent=11 // pred_region
        _
      $region16: #{mixed_module_forward.3} parent=11 // pred_fallthru
        _
      // Predicated region
      $region17: #{mixed_module_forward.3} parent=11 // pred_check
        %p318 = pneg %p125
      $region18: #{mixed_module_forward.3} parent=11 // pred_check_branch
        %320 = sbr.rel (%p318) target = $region20
      $region19: #{mixed_module_forward.3} parent=11 // pred_region
        _
      $region20: #{mixed_module_forward.3} parent=11 // pred_fallthru
        _
      // Predicated region
      $region21: #{mixed_module_forward.3} parent=11 // pred_check
        %p321 = pneg %p146
      $region22: #{mixed_module_forward.3} parent=11 // pred_check_branch
        %323 = sbr.rel (%p321) target = $region24
      $region23: #{mixed_module_forward.3} parent=11 // pred_region
        _
      $region24: #{mixed_module_forward.3} parent=11 // pred_fallthru
        _
      // Predicated region
      $region25: #{mixed_module_forward.3} parent=11 // pred_check
        %p324 = pneg %p167
      $region26: #{mixed_module_forward.3} parent=11 // pred_check_branch
        %326 = sbr.rel (%p324) target = $region28
      $region27: #{mixed_module_forward.3} parent=11 // pred_region
        _
      $region28: #{mixed_module_forward.3} parent=11 // pred_fallthru
        _
      // Predicated region
      $region29: #{mixed_module_forward.3} parent=11 // pred_check
        %p327 = pneg %p188
      $region30: #{mixed_module_forward.3} parent=11 // pred_check_branch
        %329 = sbr.rel (%p327) target = $region32
      $region31: #{mixed_module_forward.3} parent=11 // pred_region
        _
      $region32: #{mixed_module_forward.3} parent=11 // pred_fallthru
        _
      // Predicated region
      $region33: #{mixed_module_forward.3} parent=11 // pred_check
        %p330 = pneg %p209
      $region34: #{mixed_module_forward.3} parent=11 // pred_check_branch
        %332 = sbr.rel (%p330) target = $region36
      $region35: #{mixed_module_forward.3} parent=11 // pred_region
        _
      $region36: #{mixed_module_forward.3} parent=11 // pred_fallthru
        _
      // Predicated region
      $region37: #{mixed_module_forward.3} parent=11 // pred_check
        %p333 = pneg %p230
      $region38: #{mixed_module_forward.3} parent=11 // pred_check_branch
        %335 = sbr.rel (%p333) target = $region40
      $region39: #{mixed_module_forward.3} parent=11 // pred_region
        _
      $region40: #{mixed_module_forward.3} parent=11 // pred_fallthru
        _
      // Predicated region
      $region41: #{mixed_module_forward.3} parent=11 // pred_check
        %p336 = pneg %p251
      $region42: #{mixed_module_forward.3} parent=11 // pred_check_branch
        %338 = sbr.rel (%p336) target = $region44
      $region43: #{mixed_module_forward.3} parent=11 // pred_region
        _
      $region44: #{mixed_module_forward.3} parent=11 // pred_fallthru
        _
      // Predicated region
      $region45: #{mixed_module_forward.3} parent=11 // pred_check
        %p339 = pneg %p272
      $region46: #{mixed_module_forward.3} parent=11 // pred_check_branch
        %341 = sbr.rel (%p339) target = $region48
      $region47: #{mixed_module_forward.3} parent=11 // pred_region
        _
      $region48: #{mixed_module_forward.3} parent=11 // pred_fallthru
        _
    $region12: #{mixed_module_forward.3} parent=5 // pred_fallthru
      _
    %p342 = scmp.lt.s32.totalorder %s17, 2
    // Predicated region
    $region49: #{mixed_module_forward.3} parent=5 // pred_check
      %p343 = pneg %p342
    $region50: #{mixed_module_forward.3} parent=5 // pred_check_branch
      %345 = sbr.rel (%p343) target = $region52
    $region51: #{mixed_module_forward.3} parent=5 // pred_region
      // Predicated region
      $region53: #{mixed_module_forward.3} parent=51 // pred_check
        %p346 = pneg %p51
      $region54: #{mixed_module_forward.3} parent=51 // pred_check_branch
        %348 = sbr.rel (%p346) target = $region56
      $region55: #{mixed_module_forward.3} parent=51 // pred_region
        %s349 = smul.u32 2, %s25
        %p350 = scmp.lt.s32.totalorder %s24, 1
        %s351 = scalar_select %p350, %s24, 1
        %p352 = scmp.lt.s32.totalorder %s349, 1
        %s353 = scalar_select %p352, %s349, 1
        %s354 = smul.addr %s351, 2
        %s355 = sadd.s32 %s353, %s354
        %s356 = smul.addr %s355, 4
        %s357 = scalar_lea.vmem %s0, %s356
        %s358 = smul.u32 2, %s25
      $region56: #{mixed_module_forward.3} parent=51 // pred_fallthru
        _
      // Predicated region
      $region57: #{mixed_module_forward.3} parent=51 // pred_check
        %p359 = pneg %p77
      $region58: #{mixed_module_forward.3} parent=51 // pred_check_branch
        %361 = sbr.rel (%p359) target = $region60
      $region59: #{mixed_module_forward.3} parent=51 // pred_region
        %p362 = scmp.lt.s32.totalorder %s24, 1
        %s363 = scalar_select %p362, %s24, 1
        %s364 = scalar_lea.vmem %s1, %s363
      $region60: #{mixed_module_forward.3} parent=51 // pred_fallthru
        _
    $region52: #{mixed_module_forward.3} parent=5 // pred_fallthru
      _
    %p365 = scmp.le.s32.totalorder 1, %s17
    %p366 = scmp.lt.s32.totalorder %s17, 3
    %p367 = pnand %p365, %p366
    %p368 = pneg %p367
    // Predicated region
    $region61: #{mixed_module_forward.3} parent=5 // pred_check
      _
    $region62: #{mixed_module_forward.3} parent=5 // pred_check_branch
      %370 = sbr.rel (%p367) target = $region64
    $region63: #{mixed_module_forward.3} parent=5 // pred_region
      %s371 = ssub.s32 %s17, 1
      %s372 = smul.u32 2, %s27
      %p373 = scmp.lt.s32.totalorder %s26, 1
      %s374 = scalar_select %p373, %s26, 1
      %p375 = scmp.lt.s32.totalorder %s372, 1
      %s376 = scalar_select %p375, %s372, 1
      %s377 = smul.addr %s374, 2
      %s378 = sadd.s32 %s376, %s377
      %s379 = smul.addr %s378, 4
      %s380 = scalar_lea.vmem %s0, %s379
      %p381 = pneg %p57
      %p382 = pneg %p54
      %p383 = scmp.lt.s32.totalorder %s26, 1
      %s384 = scalar_select %p383, %s26, 1
      %s385 = scalar_lea.vmem %s1, %s384
      %p386 = pneg %p83
      %p387 = pneg %p80
      %p388 = pneg %p104
      %p389 = pneg %p101
      %p390 = pneg %p125
      %p391 = pneg %p122
      %p392 = pneg %p146
      %p393 = pneg %p143
      %p394 = pneg %p167
      %p395 = pneg %p164
      %p396 = pneg %p188
      %p397 = pneg %p185
      %p398 = pneg %p209
      %p399 = pneg %p206
      %p400 = pneg %p230
      %p401 = pneg %p227
      %p402 = pneg %p251
      %p403 = pneg %p248
      %p404 = pneg %p272
      %p405 = pneg %p269
      %p406 = pneg %p300
      %p407 = pneg %p297
      %p408 = scmp.lt.s32.totalorder %s26, 1
      %s409 = scalar_select %p408, %s26, 1
      %p410 = scmp.lt.s32.totalorder %s27, 0
      %s411 = scalar_select %p410, %s27, 0
      %s412 = sadd.s32 %s411, %s409
      %s413 = smul.addr %s412, 2
      %s414 = scalar_lea.vmem %s11, %s413
      %s415 = smul.u32 2, %s27
      %p416 = scmp.lt.s32.totalorder %s26, 1
      %s417 = scalar_select %p416, %s26, 1
      %p418 = scmp.lt.s32.totalorder %s415, 1
      %s419 = scalar_select %p418, %s415, 1
      %s420 = smul.addr %s417, 2
      %s421 = sadd.s32 %s419, %s420
      %s422 = smul.addr %s421, 4
      %s423 = scalar_lea.vmem %s0, %s422
      %s424 = smul.u32 2, %s27
      %p425 = scmp.lt.s32.totalorder %s26, 1
      %s426 = scalar_select %p425, %s26, 1
      %s427 = scalar_lea.vmem %s1, %s426
      %p428 = scmp.lt.s32.totalorder %s26, 1
      %s429 = scalar_select %p428, %s26, 1
      %p430 = scmp.lt.s32.totalorder %s27, 0
      %s431 = scalar_select %p430, %s27, 0
      %s432 = sadd.s32 %s431, %s429
      %s433 = smul.addr %s432, 2
      %s434 = scalar_lea.vmem %s11, %s433
      %v436 = vld [vmem:[%s423] sm:$0xf]
      %v437 = vld [vmem:[%s423 + $0x4] sm:$0xf]
      %v438 = vld [vmem:[%s2] sm:$0xf]
      %v439 = vld [vmem:[%s2 + $0x4] sm:$0xf]
      %v440 = vld [vmem:[%s2 + $0x8] sm:$0xf]
      %v441 = vld [vmem:[%s2 + $0xc] sm:$0xf]
      %v442 = vld [vmem:[%s3] sm:$0x1]
      %v444 = vlaneseq
      %v445 = vshrl.u32 %v444, 7
      %v446 = vsub.s32 0, %v445
      %v447 = vrot.slane %v442, %v446
      %v451 = vunpack.c.l.b16 %v436
      %v452 = vunpack.c.l.b16 %v437
      %v453 = vpack.c.b16 %v452, %v451
      %v458 = vunpack.c.l.b16 %v438
      %v459 = vunpack.c.l.b16 %v439
      %v460 = vunpack.c.l.b16 %v440
      %v461 = vunpack.c.l.b16 %v441
      %v462 = vpack.c.b16 %v459, %v458
      %v463 = vpack.c.b16 %v461, %v460
      %vm466 = vcmask 261120
      %v468 = vsel %vm466, %v453, 0
      %470 = vmatprep.subr.bf16.mxu0 0
      %471 = vmatpush1.bf16.msra.mxu0 %v462
      %472 = vmatprep.subr.bf16.mxu0 0
      %473 = vmatpush1.bf16.msra.mxu0 %v463
      %474 = vmatprep.subr.bf16.mxu0 0
      %475 = vmatpush1.bf16.msra.mxu0 0
      %476 = vmatprep.subr.bf16.mxu0 0
      %477 = vmatpush1.bf16.msra.mxu0 0
      %478 = vmatprep.subr.bf16.mxu0 0
      %479 = vmatpush1.bf16.msra.mxu0 0
      %480 = vmatprep.subr.bf16.mxu0 0
      %481 = vmatpush1.bf16.msra.mxu0 0
      %482 = vmatprep.subr.bf16.mxu0 0
      %483 = vmatpush1.bf16.msra.mxu0 0
      %484 = vmatprep.subr.bf16.mxu0 0
      %485 = vmatpush1.bf16.msra.mxu0 0
      %486 = vmatprep.subr.bf16.mxu0 0
      %487 = vmatpush1.bf16.msra.mxu0 0
      %488 = vmatprep.subr.bf16.mxu0 0
      %489 = vmatpush1.bf16.msra.mxu0 0
      %490 = vmatprep.subr.bf16.mxu0 0
      %491 = vmatpush1.bf16.msra.mxu0 0
      %492 = vmatprep.subr.bf16.mxu0 0
      %493 = vmatpush1.bf16.msra.mxu0 0
      %494 = vmatprep.subr.bf16.mxu0 0
      %495 = vmatpush1.bf16.msra.mxu0 0
      %496 = vmatprep.subr.bf16.mxu0 0
      %497 = vmatpush1.bf16.msra.mxu0 0
      %498 = vmatprep.subr.bf16.mxu0 0
      %499 = vmatpush1.bf16.msra.mxu0 0
      %500 = vmatprep.subr.bf16.mxu0 0
      %501 = vmatpush1.bf16.msra.mxu0 0
      %502 = vmatprep.mubr.bf16.mxu0 0
      %503 = vmatmul.mubr.bf16.gmra.mrb[0].mxu0 %v468
      %v504 = vpop.f32.mrb[0].mxu0
      %v505 = vadd.f32 %v447, %v504
      %v506 = vpop.f32.mrb[0].mxu0
      %v507 = vpop.f32.mrb[0].mxu0
      %v508 = vadd.f32 %v447, %v507
      %v509 = vpop.f32.mrb[0].mxu0
      %510 = vdwg.mxu0
      %v511 = vmax.f32 %v505, 0.0
      %v512 = vmax.f32 %v508, 0.0
      %v513 = vld [vmem:[%s4] sm:$0x1]
      %v514 = vlaneseq
      %v515 = vshrl.u32 %v514, 7
      %v516 = vsub.s32 0, %v515
      %v517 = vrot.slane %v513, %v516
      %v518 = vmul.f32 %v511, %v517
      %v519 = vmul.f32 %v512, %v517
      %v520 = vld [vmem:[%s4 + $0x1] sm:$0x1]
      %v521 = vlaneseq
      %v522 = vshrl.u32 %v521, 7
      %v523 = vsub.s32 0, %v522
      %v524 = vrot.slane %v520, %v523
      %v525 = vmul.f32 %v511, %v524
      %v526 = vmul.f32 %v512, %v524
      %v529 = vrot.slane %v525, 1
      %v530 = vrot.slane %v526, 1
      %v533 = vadd.f32 %v518, %v529
      %v534 = vadd.f32 %v519, %v530
      %v535 = vld [vmem:[%s4 + $0x2] sm:$0x1]
      %v536 = vlaneseq
      %v537 = vshrl.u32 %v536, 7
      %v538 = vsub.s32 0, %v537
      %v539 = vrot.slane %v535, %v538
      %v540 = vmul.f32 %v511, %v539
      %v541 = vmul.f32 %v512, %v539
      %v544 = vrot.slane %v540, 2
      %v545 = vrot.slane %v541, 2
      %v548 = vadd.f32 %v533, %v544
      %v549 = vadd.f32 %v534, %v545
      %v550 = vld [vmem:[%s4 + $0x3] sm:$0x1]
      %v551 = vlaneseq
      %v552 = vshrl.u32 %v551, 7
      %v553 = vsub.s32 0, %v552
      %v554 = vrot.slane %v550, %v553
      %v555 = vmul.f32 %v511, %v554
      %v556 = vmul.f32 %v512, %v554
      %v559 = vrot.slane %v555, 3
      %v560 = vrot.slane %v556, 3
      %v563 = vadd.f32 %v548, %v559
      %v564 = vadd.f32 %v549, %v560
      %v565 = vld [vmem:[%s4 + $0x4] sm:$0x1]
      %v566 = vlaneseq
      %v567 = vshrl.u32 %v566, 7
      %v568 = vsub.s32 0, %v567
      %v569 = vrot.slane %v565, %v568
      %v570 = vmul.f32 %v511, %v569
      %v571 = vmul.f32 %v512, %v569
      %v574 = vrot.slane %v570, 4
      %v575 = vrot.slane %v571, 4
      %v578 = vadd.f32 %v563, %v574
      %v579 = vadd.f32 %v564, %v575
      %v580 = vld [vmem:[%s4 + $0x5] sm:$0x1]
      %v581 = vlaneseq
      %v582 = vshrl.u32 %v581, 7
      %v583 = vsub.s32 0, %v582
      %v584 = vrot.slane %v580, %v583
      %v585 = vmul.f32 %v511, %v584
      %v586 = vmul.f32 %v512, %v584
      %v589 = vrot.slane %v585, 5
      %v590 = vrot.slane %v586, 5
      %v593 = vadd.f32 %v578, %v589
      %v594 = vadd.f32 %v579, %v590
      %v595 = vld [vmem:[%s4 + $0x6] sm:$0x1]
      %v596 = vlaneseq
      %v597 = vshrl.u32 %v596, 7
      %v598 = vsub.s32 0, %v597
      %v599 = vrot.slane %v595, %v598
      %v600 = vmul.f32 %v511, %v599
      %v601 = vmul.f32 %v512, %v599
      %v604 = vrot.slane %v600, 6
      %v605 = vrot.slane %v601, 6
      %v608 = vadd.f32 %v593, %v604
      %v609 = vadd.f32 %v594, %v605
      %v610 = vld [vmem:[%s4 + $0x7] sm:$0x1]
      %v611 = vlaneseq
      %v612 = vshrl.u32 %v611, 7
      %v613 = vsub.s32 0, %v612
      %v614 = vrot.slane %v610, %v613
      %v615 = vmul.f32 %v511, %v614
      %v616 = vmul.f32 %v512, %v614
      %v619 = vrot.slane %v615, 7
      %v620 = vrot.slane %v616, 7
      %v623 = vadd.f32 %v608, %v619
      %v624 = vadd.f32 %v609, %v620
      %v625 = vld [vmem:[%s5] sm:$0x1]
      %v627 = vlaneseq
      %v628 = vshrl.u32 %v627, 7
      %v629 = vsub.s32 0, %v628
      %v630 = vrot.slane %v625, %v629
      %v632 = vadd.f32 %v623, %v630
      %v633 = vadd.f32 %v624, %v630
      %v634 = vpack.c.bf16 %v632, %v632
      %v635 = vpack.c.bf16 %v633, %v633
      %v636 = vld [vmem:[%s6] sm:$0xf]
      %v637 = vld [vmem:[%s6 + $0x4] sm:$0xf]
      %v638 = vld [vmem:[%s6 + $0x8] sm:$0xf]
      %v639 = vld [vmem:[%s6 + $0xc] sm:$0xf]
      %v642 = vunpack.c.l.b16 %v634
      %v643 = vunpack.c.l.b16 %v635
      %v644 = vrot.slane %v643, 7
      %vm645 = vcmask 1041409
      %v646 = vsel %vm645, %v644, %v642
      %v647 = vpack.c.b16 %v646, %v646
      %v652 = vunpack.c.l.b16 %v636
      %v653 = vunpack.c.l.b16 %v637
      %v654 = vunpack.c.l.b16 %v638
      %v655 = vunpack.c.l.b16 %v639
      %v656 = vpack.c.b16 %v653, %v652
      %v657 = vpack.c.b16 %v655, %v654
      %v661 = vsel %vm466, %v647, 0
      %663 = vmatprep.subr.bf16.mxu0 0
      %664 = vmatpush1.bf16.msra.mxu0 %v656
      %665 = vmatprep.subr.bf16.mxu0 0
      %666 = vmatpush1.bf16.msra.mxu0 %v657
      %667 = vmatprep.subr.bf16.mxu0 0
      %668 = vmatpush1.bf16.msra.mxu0 0
      %669 = vmatprep.subr.bf16.mxu0 0
      %670 = vmatpush1.bf16.msra.mxu0 0
      %671 = vmatprep.subr.bf16.mxu0 0
      %672 = vmatpush1.bf16.msra.mxu0 0
      %673 = vmatprep.subr.bf16.mxu0 0
      %674 = vmatpush1.bf16.msra.mxu0 0
      %675 = vmatprep.subr.bf16.mxu0 0
      %676 = vmatpush1.bf16.msra.mxu0 0
      %677 = vmatprep.subr.bf16.mxu0 0
      %678 = vmatpush1.bf16.msra.mxu0 0
      %679 = vmatprep.subr.bf16.mxu0 0
      %680 = vmatpush1.bf16.msra.mxu0 0
      %681 = vmatprep.subr.bf16.mxu0 0
      %682 = vmatpush1.bf16.msra.mxu0 0
      %683 = vmatprep.subr.bf16.mxu0 0
      %684 = vmatpush1.bf16.msra.mxu0 0
      %685 = vmatprep.subr.bf16.mxu0 0
      %686 = vmatpush1.bf16.msra.mxu0 0
      %687 = vmatprep.subr.bf16.mxu0 0
      %688 = vmatpush1.bf16.msra.mxu0 0
      %689 = vmatprep.subr.bf16.mxu0 0
      %690 = vmatpush1.bf16.msra.mxu0 0
      %691 = vmatprep.subr.bf16.mxu0 0
      %692 = vmatpush1.bf16.msra.mxu0 0
      %693 = vmatprep.subr.bf16.mxu0 0
      %694 = vmatpush1.bf16.msra.mxu0 0
      %695 = vmatprep.mubr.bf16.mxu0 0
      %696 = vmatmul.mubr.bf16.gmra.mrb[0].mxu0 %v661
      %v697 = vpop.f32.mrb[0].mxu0
      %v698 = vadd.f32 0.0, %v697
      %v699 = vpop.f32.mrb[0].mxu0
      %v700 = vpop.f32.mrb[0].mxu0
      %v701 = vpop.f32.mrb[0].mxu0
      %702 = vdwg.mxu0
      %v703 = vld [vmem:[%s427] sm:$0x1]
      %v704 = vld [vmem:[%s7] sm:$0xf]
      %v705 = vld [vmem:[%s7 + $0x4] sm:$0xf]
      %v706 = vld [vmem:[%s7 + $0x8] sm:$0xf]
      %v707 = vld [vmem:[%s7 + $0xc] sm:$0xf]
      %v712 = vunpack.c.l.b16 %v704
      %v713 = vunpack.c.l.b16 %v705
      %v714 = vunpack.c.l.b16 %v706
      %v715 = vunpack.c.l.b16 %v707
      %v716 = vpack.c.b16 %v713, %v712
      %v717 = vpack.c.b16 %v715, %v714
      %v721 = vsel %vm466, %v703, 0
      %723 = vmatprep.subr.bf16.mxu0 0
      %724 = vmatpush1.bf16.msra.mxu0 %v716
      %725 = vmatprep.subr.bf16.mxu0 0
      %726 = vmatpush1.bf16.msra.mxu0 %v717
      %727 = vmatprep.subr.bf16.mxu0 0
      %728 = vmatpush1.bf16.msra.mxu0 0
      %729 = vmatprep.subr.bf16.mxu0 0
      %730 = vmatpush1.bf16.msra.mxu0 0
      %731 = vmatprep.subr.bf16.mxu0 0
      %732 = vmatpush1.bf16.msra.mxu0 0
      %733 = vmatprep.subr.bf16.mxu0 0
      %734 = vmatpush1.bf16.msra.mxu0 0
      %735 = vmatprep.subr.bf16.mxu0 0
      %736 = vmatpush1.bf16.msra.mxu0 0
      %737 = vmatprep.subr.bf16.mxu0 0
      %738 = vmatpush1.bf16.msra.mxu0 0
      %739 = vmatprep.subr.bf16.mxu0 0
      %740 = vmatpush1.bf16.msra.mxu0 0
      %741 = vmatprep.subr.bf16.mxu0 0
      %742 = vmatpush1.bf16.msra.mxu0 0
      %743 = vmatprep.subr.bf16.mxu0 0
      %744 = vmatpush1.bf16.msra.mxu0 0
      %745 = vmatprep.subr.bf16.mxu0 0
      %746 = vmatpush1.bf16.msra.mxu0 0
      %747 = vmatprep.subr.bf16.mxu0 0
      %748 = vmatpush1.bf16.msra.mxu0 0
      %749 = vmatprep.subr.bf16.mxu0 0
      %750 = vmatpush1.bf16.msra.mxu0 0
      %751 = vmatprep.subr.bf16.mxu0 0
      %752 = vmatpush1.bf16.msra.mxu0 0
      %753 = vmatprep.subr.bf16.mxu0 0
      %754 = vmatpush1.bf16.msra.mxu0 0
      %755 = vmatprep.mubr.bf16.mxu0 0
      %756 = vmatmul.mubr.bf16.gmra.mrb[0].mxu0 %v721
      %v757 = vpop.f32.mrb[0].mxu0
      %v758 = vadd.f32 0.0, %v757
      %v759 = vpop.f32.mrb[0].mxu0
      %v760 = vpop.f32.mrb[0].mxu0
      %v761 = vpop.f32.mrb[0].mxu0
      %762 = vdwg.mxu0
      %v763 = vlaneseq
      %v764 = vshrl.u32 %v763, 7
      %v765 = vsub.s32 0, %v764
      %v766 = vrot.slane %v758, %v765
      %v767 = vadd.f32 %v698, %v766
      %v768 = vld [vmem:[%s8] sm:$0x1]
      %v770 = vlaneseq
      %v771 = vshrl.u32 %v770, 7
      %v772 = vsub.s32 0, %v771
      %v773 = vrot.slane %v768, %v772
      %v775 = vadd.f32 %v767, %v773
      %v776 = vunpack.c.l.bf16 %v703
      %v777 = vsub.f32 0.0, %v775
      %v778 = vmul.f32 %v777, 1.442695
      %v779 = vpow.pop %v778
      %v780 = vadd.f32 %v779, 1.0
      %v781 = vrcp.pop %v780
      %v782 = vmul.f32 1.0, %v781
      %v783 = vlaneseq
      %v784 = vshrl.u32 %v783, 7
      %v785 = vsub.s32 0, %v784
      %v786 = vrot.slane %v776, %v785
      %v787 = vmul.f32 %v786, %v782
      %v788 = vpack.c.bf16 %v787, %v787
      %v789 = vld [vmem:[%s9] sm:$0xf]
      %v790 = vld [vmem:[%s9 + $0x4] sm:$0xf]
      %v791 = vld [vmem:[%s9 + $0x8] sm:$0xf]
      %v792 = vld [vmem:[%s9 + $0xc] sm:$0xf]
      %v797 = vunpack.c.l.b16 %v789
      %v798 = vunpack.c.l.b16 %v790
      %v799 = vunpack.c.l.b16 %v791
      %v800 = vunpack.c.l.b16 %v792
      %v801 = vpack.c.b16 %v798, %v797
      %v802 = vpack.c.b16 %v800, %v799
      %v806 = vsel %vm466, %v788, 0
      %808 = vmatprep.subr.bf16.mxu0 0
      %809 = vmatpush1.bf16.msra.mxu0 %v801
      %810 = vmatprep.subr.bf16.mxu0 0
      %811 = vmatpush1.bf16.msra.mxu0 %v802
      %812 = vmatprep.subr.bf16.mxu0 0
      %813 = vmatpush1.bf16.msra.mxu0 0
      %814 = vmatprep.subr.bf16.mxu0 0
      %815 = vmatpush1.bf16.msra.mxu0 0
      %816 = vmatprep.subr.bf16.mxu0 0
      %817 = vmatpush1.bf16.msra.mxu0 0
      %818 = vmatprep.subr.bf16.mxu0 0
      %819 = vmatpush1.bf16.msra.mxu0 0
      %820 = vmatprep.subr.bf16.mxu0 0
      %821 = vmatpush1.bf16.msra.mxu0 0
      %822 = vmatprep.subr.bf16.mxu0 0
      %823 = vmatpush1.bf16.msra.mxu0 0
      %824 = vmatprep.subr.bf16.mxu0 0
      %825 = vmatpush1.bf16.msra.mxu0 0
      %826 = vmatprep.subr.bf16.mxu0 0
      %827 = vmatpush1.bf16.msra.mxu0 0
      %828 = vmatprep.subr.bf16.mxu0 0
      %829 = vmatpush1.bf16.msra.mxu0 0
      %830 = vmatprep.subr.bf16.mxu0 0
      %831 = vmatpush1.bf16.msra.mxu0 0
      %832 = vmatprep.subr.bf16.mxu0 0
      %833 = vmatpush1.bf16.msra.mxu0 0
      %834 = vmatprep.subr.bf16.mxu0 0
      %835 = vmatpush1.bf16.msra.mxu0 0
      %836 = vmatprep.subr.bf16.mxu0 0
      %837 = vmatpush1.bf16.msra.mxu0 0
      %838 = vmatprep.subr.bf16.mxu0 0
      %839 = vmatpush1.bf16.msra.mxu0 0
      %840 = vmatprep.mubr.bf16.mxu0 0
      %841 = vmatmul.mubr.bf16.gmra.mrb[0].mxu0 %v806
      %v842 = vpop.f32.mrb[0].mxu0
      %v843 = vadd.f32 0.0, %v842
      %v844 = vpop.f32.mrb[0].mxu0
      %v845 = vpop.f32.mrb[0].mxu0
      %v846 = vpop.f32.mrb[0].mxu0
      %847 = vdwg.mxu0
      %849 = vrot.lane.b32.xlu0 %v843, 32
      %v850 = vpop.permute.xlu0 %849
      %v852 = vadd.f32 %v698, %v850
      %v853 = vld [vmem:[%s10] sm:$0x1]
      %v855 = vlaneseq
      %v856 = vshrl.u32 %v855, 7
      %v857 = vsub.s32 0, %v856
      %v858 = vrot.slane %v853, %v857
      %859 = vrot.lane.b32.xlu0 %v858, 32
      %v860 = vpop.permute.xlu0 %859
      %v862 = vadd.f32 %v852, %v860
      %864 = vrot.lane.b32.xlu0 %v862, 96
      %v865 = vpop.permute.xlu0 %864
      %vm867 = vcmask 254976
      %868 = vst.msk [vmem:[%s434] sm:$0x3] %vm867, %v865
      %p869 = scmp.lt.s32.totalorder %s26, 1
      %s870 = scalar_select %p869, %s26, 1
      %p871 = scmp.lt.s32.totalorder %s27, 0
      %s872 = scalar_select %p871, %s27, 0
      %s873 = sadd.s32 %s872, %s870
      %s874 = smul.addr %s873, 2
      %s875 = scalar_lea.vmem %s11, %s874
      // Predicated region
      $region65: #{mixed_module_forward.3} parent=63 // pred_check
        %p876 = pneg %p297
      $region66: #{mixed_module_forward.3} parent=63 // pred_check_branch
        %878 = sbr.rel (%p876) target = $region68
      $region67: #{mixed_module_forward.3} parent=63 // pred_region
        _
      $region68: #{mixed_module_forward.3} parent=63 // pred_fallthru
        _
    $region64: #{mixed_module_forward.3} parent=5 // pred_fallthru
      _
    %p879 = scmp.le.s32.totalorder 2, %s17
    // Predicated region
    $region69: #{mixed_module_forward.3} parent=5 // pred_check
      %p880 = pneg %p879
    $region70: #{mixed_module_forward.3} parent=5 // pred_check_branch
      %882 = sbr.rel (%p880) target = $region72
    $region71: #{mixed_module_forward.3} parent=5 // pred_region
      %s883 = ssub.s32 %s17, 2
      // Predicated region
      $region73: #{mixed_module_forward.3} parent=71 // pred_check
        %p884 = pneg %p303
      $region74: #{mixed_module_forward.3} parent=71 // pred_check_branch
        %886 = sbr.rel (%p884) target = $region76
      $region75: #{mixed_module_forward.3} parent=71 // pred_region
        %p887 = scmp.lt.s32.totalorder %s28, 1
        %s888 = scalar_select %p887, %s28, 1
        %p889 = scmp.lt.s32.totalorder %s29, 0
        %s890 = scalar_select %p889, %s29, 0
        %s891 = sadd.s32 %s890, %s888
        %s892 = smul.addr %s891, 2
        %s893 = scalar_lea.vmem %s11, %s892
      $region76: #{mixed_module_forward.3} parent=71 // pred_fallthru
        _
    $region72: #{mixed_module_forward.3} parent=5 // pred_fallthru
      _
  $region6: #{mixed_module_forward.3} parent=0 // loop_footer
    %s21 = sadd.s32 1, %s17
  $region7: #{mixed_module_forward.3} parent=0 // loop_footer_branch
    %16 = sbr.rel target = $region3
  $region8: #{mixed_module_forward.3} parent=0 // loop_exit
    _

</llo_original>
